<compile_context>
chip_gen: v5e
topology: v5e:2x2
jax: 0.10.0
libtpu: 0.0.40
codegen_flags: <defaults>
</compile_context>

<pallas_src>
import jax
import jax.numpy as jnp
from jax import lax
from jax.experimental import pallas as pl
from jax.experimental.pallas import tpu as pltpu


def _attention_kernel(x_ref, wq_ref, wk_ref, wv_ref, wo_ref, bo_ref, o_ref):
    """One grid step = one tile of B_tile batch elements.

    x_ref:  (BT, N, D)   VMEM
    wq_ref: (H, D, dh)   VMEM (head-major; softmax scale folded into Wq)
    wk_ref: (H, D, dh)   VMEM
    wv_ref: (H, D, dh)   VMEM
    wo_ref: (H, dh, D)   VMEM
    bo_ref: (1, D)       VMEM (to_out bias; zeros when project_out is False)
    o_ref:  (BT, N, D)   VMEM
    """
    bt, n, d = x_ref.shape
    h_total = wq_ref.shape[0]
    dt = x_ref.dtype
    m = bt * n

    # Merge (BT, N) -> rows so the projection matmuls present M = BT*N rows to
    # the MXU (layout-free merge: last dim unchanged, sublane-aligned).
    x2d = x_ref[...].reshape(m, d)

    # Per-head projections over all M rows.  Head index is a leading-axis ref
    # index -> no lane-crossing slice; operands stay in `dt`, accumulate in f32.
    qs, ks, vs = [], [], []
    for h in range(h_total):  # heads is small & static; use lax.fori_loop if large
        qs.append(jnp.dot(x2d, wq_ref[h],
                          preferred_element_type=jnp.float32).astype(dt))
        ks.append(jnp.dot(x2d, wk_ref[h],
                          preferred_element_type=jnp.float32).astype(dt))
        vs.append(jnp.dot(x2d, wv_ref[h],
                          preferred_element_type=jnp.float32).astype(dt))

    bias = bo_ref[...].astype(jnp.float32)              # (1, D)

    for b in range(bt):
        lo, hi = b * n, (b + 1) * n                     # sublane-aligned rows
        y_b = jnp.zeros((n, d), jnp.float32)
        for h in range(h_total):
            qb = qs[h][lo:hi]                           # (N, dh)
            kb = ks[h][lo:hi]
            vb = vs[h][lo:hi]

            # scores = q @ k^T without materializing k^T (contract dh with dh);
            # the softmax scale is already folded into Wq.
            s = lax.dot_general(qb, kb, (((1,), (1,)), ((), ())),
                                preferred_element_type=jnp.float32)   # (N, N) f32

            # numerically-stable softmax; normalization deferred past the PV dot
            mx = jnp.max(s, axis=-1, keepdims=True)
            p = jnp.exp(s - mx)
            l = jnp.sum(p, axis=-1, keepdims=True)
            pv = jnp.dot(p.astype(dt), vb,
                         preferred_element_type=jnp.float32)          # (N, dh)
            head_out = (pv * pl.reciprocal(l, approx=True)).astype(dt)

            # per-head output-projection accumulation (replaces concat + big dot)
            y_b = y_b + jnp.dot(head_out, wo_ref[h],
                                preferred_element_type=jnp.float32)   # (N, D)
        o_ref[b] = (y_b + bias).astype(o_ref.dtype)


def _pick_b_tile(batch, seq, target_rows=256):
    """Largest divisor of `batch` with b_tile*seq <= target_rows (MXU row fill).

    Trade-off: a bigger tile fills MXU sublanes; more (smaller) grid steps give
    megacore / dual-TC (v7x) parallelism.  Biased toward row fill here.
    """
    best = 1
    for cand in range(1, batch + 1):
        if batch % cand == 0 and cand * seq <= max(target_rows, seq):
            best = cand
    return best


def attention_forward(x, w_qkv, w_out=None, b_out=None, *, heads, dim_head):
    """x: (B, N, D); w_qkv: (D, 3*H*dh); w_out: (H*dh, D); b_out: (D,)."""
    B, N, D = x.shape
    inner = heads * dim_head
    assert w_qkv.shape == (D, 3 * inner)
    project_out = not (heads == 1 and dim_head == D)
    if project_out:
        assert w_out is not None and w_out.shape == (inner, D)
        if b_out is None:
            b_out = jnp.zeros((D,), x.dtype)
    else:
        # PyTorch to_out == nn.Identity(): exact identity projection, zero bias.
        w_out = jnp.eye(inner, dtype=x.dtype)
        b_out = jnp.zeros((D,), x.dtype)

    scale = dim_head ** (-0.5)

    # One-time weight prep (would normally happen at weight-load time):
    # head-major slabs + softmax scale folded into Wq.
    wq, wk, wv = jnp.split(w_qkv, 3, axis=1)             # each (D, H*dh)

    def head_major(w):                                   # (D, H*dh) -> (H, D, dh)
        return w.reshape(D, heads, dim_head).transpose(1, 0, 2)

    wq_hm = head_major(wq) * jnp.asarray(scale, w_qkv.dtype)
    wk_hm = head_major(wk)
    wv_hm = head_major(wv)
    wo_hm = w_out.reshape(heads, dim_head, D)            # (H, dh, D)
    bo = b_out.reshape(1, D)

    b_tile = _pick_b_tile(B, N)
    grid = (B // b_tile,)

    return pl.pallas_call(
        _attention_kernel,
        out_shape=jax.ShapeDtypeStruct((B, N, D), x.dtype),
        grid_spec=pltpu.PrefetchScalarGridSpec(
            num_scalar_prefetch=0,
            grid=grid,
            in_specs=[
                pl.BlockSpec((b_tile, N, D), lambda i: (i, 0, 0)),
                pl.BlockSpec((heads, D, dim_head), lambda i: (0, 0, 0)),
                pl.BlockSpec((heads, D, dim_head), lambda i: (0, 0, 0)),
                pl.BlockSpec((heads, D, dim_head), lambda i: (0, 0, 0)),
                pl.BlockSpec((heads, dim_head, D), lambda i: (0, 0, 0)),
                pl.BlockSpec((1, D), lambda i: (0, 0)),
            ],
            out_specs=pl.BlockSpec((b_tile, N, D), lambda i: (i, 0, 0)),
        ),
        compiler_params=pltpu.CompilerParams(
            dimension_semantics=("parallel",)),
    )(x, wq_hm, wk_hm, wv_hm, wo_hm, bo)


def attention_reference(x, w_qkv, w_out=None, b_out=None, *, heads, dim_head):
    """Pure-JAX reference matching the PyTorch forward (dropout p=0)."""
    B, N, D = x.shape
    inner = heads * dim_head
    scale = dim_head ** (-0.5)
    qkv = jnp.einsum("bnd,de->bne", x, w_qkv)
    q, k, v = jnp.split(qkv, 3, axis=-1)

    def to_heads(t):  # 'b n (h d) -> b h n d'
        return t.reshape(B, N, heads, dim_head).transpose(0, 2, 1, 3)

    q, k, v = map(to_heads, (q, k, v))
    dots = jnp.einsum("bhnd,bhmd->bhnm", q, k) * scale
    attn = jax.nn.softmax(dots, axis=-1)
    out = jnp.einsum("bhnm,bhmd->bhnd", attn, v)
    out = out.transpose(0, 2, 1, 3).reshape(B, N, inner)  # 'b h n d -> b n (h d)'
    if not (heads == 1 and dim_head == D):
        bias = b_out if b_out is not None else jnp.zeros((D,), x.dtype)
        out = jnp.einsum("bne,ed->bnd", out, w_out) + bias
    return out


if __name__ == "__main__":
    # Small, module-consistent shapes.
    B, N, dim = 2, 8, 32
    heads, dim_head = 4, 16
    inner_dim = heads * dim_head

    key = jax.random.PRNGKey(0)
    kx, kqkv, kout, kb = jax.random.split(key, 4)

    x = jax.random.normal(kx, (B, N, dim), dtype=jnp.float32)
    # nn.Linear(dim, inner_dim*3, bias=False) weight (transposed), and
    # nn.Linear(inner_dim, dim) weight (transposed) + bias.
    w_qkv = jax.random.normal(kqkv, (dim, 3 * inner_dim), dtype=jnp.float32) * 0.05
    w_out = jax.random.normal(kout, (inner_dim, dim), dtype=jnp.float32) * 0.05
    b_out = jax.random.normal(kb, (dim,), dtype=jnp.float32) * 0.05

    y = attention_forward(x, w_qkv, w_out, b_out, heads=heads, dim_head=dim_head)
    y = jax.block_until_ready(y)

    y_ref = attention_reference(x, w_qkv, w_out, b_out,
                                heads=heads, dim_head=dim_head)
    assert y.shape == (B, N, dim)
    # approx=True reciprocal in the softmax denominator -> allow ~1e-3-level error
    max_err = float(jnp.max(jnp.abs(y - y_ref)))
    assert jnp.allclose(y, y_ref, atol=2e-3, rtol=2e-3), max_err

    print("KERNEL_OK")
</pallas_src>

<mosaic_0001>
module attributes {stable_mosaic.version = 11 : i64} {
  func.func @_attention_kernel(%arg0: i32, %arg1: memref<2x8x32xf32, #tpu.memory_space<vmem>>, %arg2: memref<4x32x16xf32, #tpu.memory_space<vmem>>, %arg3: memref<4x32x16xf32, #tpu.memory_space<vmem>>, %arg4: memref<4x32x16xf32, #tpu.memory_space<vmem>>, %arg5: memref<4x16x32xf32, #tpu.memory_space<vmem>>, %arg6: memref<1x32xf32, #tpu.memory_space<vmem>>, %arg7: memref<2x8x32xf32, #tpu.memory_space<vmem>>) attributes {dimension_semantics = [#tpu.dimension_semantics<parallel>], iteration_bounds = array<i64: 1>, scalar_prefetch = 0 : i64, scratch_operands = 0 : i64, tpu.core_type = #tpu.core_type<tc>, window_params = [{transform_indices = @transform_0, window_bounds = array<i64: 2, 8, 32>}, {pipeline_mode = #tpu.pipeline_mode<synchronous>, transform_indices = @transform_1, window_bounds = array<i64: 4, 32, 16>}, {pipeline_mode = #tpu.pipeline_mode<synchronous>, transform_indices = @transform_2, window_bounds = array<i64: 4, 32, 16>}, {pipeline_mode = #tpu.pipeline_mode<synchronous>, transform_indices = @transform_3, window_bounds = array<i64: 4, 32, 16>}, {pipeline_mode = #tpu.pipeline_mode<synchronous>, transform_indices = @transform_4, window_bounds = array<i64: 4, 16, 32>}, {pipeline_mode = #tpu.pipeline_mode<synchronous>, transform_indices = @transform_5, window_bounds = array<i64: 1, 32>}, {transform_indices = @transform_6, window_bounds = array<i64: 2, 8, 32>}]} {
    %c0 = arith.constant 0 : index
    %c0_0 = arith.constant 0 : index
    %c0_1 = arith.constant 0 : index
    %0 = vector.load %arg1[%c0, %c0_0, %c0_1] : memref<2x8x32xf32, #tpu.memory_space<vmem>>, vector<2x8x32xf32>
    %1 = vector.shape_cast %0 : vector<2x8x32xf32> to vector<16x32xf32>
    %c0_2 = arith.constant 0 : index
    %c0_3 = arith.constant 0 : index
    %c0_4 = arith.constant 0 : index
    %2 = vector.load %arg2[%c0_2, %c0_3, %c0_4] : memref<4x32x16xf32, #tpu.memory_space<vmem>>, vector<1x32x16xf32>
    %3 = vector.shape_cast %2 : vector<1x32x16xf32> to vector<32x16xf32>
    %cst = arith.constant dense<0.000000e+00> : vector<16x16xf32>
    %4 = tpu.matmul %1, %3, %cst {dimension_numbers = #tpu.dot_dimension_numbers<[1], [0], [0], [1], [0, 0, 1, 1], [], []>} : vector<16x32xf32>, vector<32x16xf32>, vector<16x16xf32> -> vector<16x16xf32>
    %c0_5 = arith.constant 0 : index
    %c0_6 = arith.constant 0 : index
    %c0_7 = arith.constant 0 : index
    %5 = vector.load %arg3[%c0_5, %c0_6, %c0_7] : memref<4x32x16xf32, #tpu.memory_space<vmem>>, vector<1x32x16xf32>
    %6 = vector.shape_cast %5 : vector<1x32x16xf32> to vector<32x16xf32>
    %cst_8 = arith.constant dense<0.000000e+00> : vector<16x16xf32>
    %7 = tpu.matmul %1, %6, %cst_8 {dimension_numbers = #tpu.dot_dimension_numbers<[1], [0], [0], [1], [0, 0, 1, 1], [], []>} : vector<16x32xf32>, vector<32x16xf32>, vector<16x16xf32> -> vector<16x16xf32>
    %c0_9 = arith.constant 0 : index
    %c0_10 = arith.constant 0 : index
    %c0_11 = arith.constant 0 : index
    %8 = vector.load %arg4[%c0_9, %c0_10, %c0_11] : memref<4x32x16xf32, #tpu.memory_space<vmem>>, vector<1x32x16xf32>
    %9 = vector.shape_cast %8 : vector<1x32x16xf32> to vector<32x16xf32>
    %cst_12 = arith.constant dense<0.000000e+00> : vector<16x16xf32>
    %10 = tpu.matmul %1, %9, %cst_12 {dimension_numbers = #tpu.dot_dimension_numbers<[1], [0], [0], [1], [0, 0, 1, 1], [], []>} : vector<16x32xf32>, vector<32x16xf32>, vector<16x16xf32> -> vector<16x16xf32>
    %c1 = arith.constant 1 : index
    %c0_13 = arith.constant 0 : index
    %c0_14 = arith.constant 0 : index
    %11 = vector.load %arg2[%c1, %c0_13, %c0_14] : memref<4x32x16xf32, #tpu.memory_space<vmem>>, vector<1x32x16xf32>
    %12 = vector.shape_cast %11 : vector<1x32x16xf32> to vector<32x16xf32>
    %cst_15 = arith.constant dense<0.000000e+00> : vector<16x16xf32>
    %13 = tpu.matmul %1, %12, %cst_15 {dimension_numbers = #tpu.dot_dimension_numbers<[1], [0], [0], [1], [0, 0, 1, 1], [], []>} : vector<16x32xf32>, vector<32x16xf32>, vector<16x16xf32> -> vector<16x16xf32>
    %c1_16 = arith.constant 1 : index
    %c0_17 = arith.constant 0 : index
    %c0_18 = arith.constant 0 : index
    %14 = vector.load %arg3[%c1_16, %c0_17, %c0_18] : memref<4x32x16xf32, #tpu.memory_space<vmem>>, vector<1x32x16xf32>
    %15 = vector.shape_cast %14 : vector<1x32x16xf32> to vector<32x16xf32>
    %cst_19 = arith.constant dense<0.000000e+00> : vector<16x16xf32>
    %16 = tpu.matmul %1, %15, %cst_19 {dimension_numbers = #tpu.dot_dimension_numbers<[1], [0], [0], [1], [0, 0, 1, 1], [], []>} : vector<16x32xf32>, vector<32x16xf32>, vector<16x16xf32> -> vector<16x16xf32>
    %c1_20 = arith.constant 1 : index
    %c0_21 = arith.constant 0 : index
    %c0_22 = arith.constant 0 : index
    %17 = vector.load %arg4[%c1_20, %c0_21, %c0_22] : memref<4x32x16xf32, #tpu.memory_space<vmem>>, vector<1x32x16xf32>
    %18 = vector.shape_cast %17 : vector<1x32x16xf32> to vector<32x16xf32>
    %cst_23 = arith.constant dense<0.000000e+00> : vector<16x16xf32>
    %19 = tpu.matmul %1, %18, %cst_23 {dimension_numbers = #tpu.dot_dimension_numbers<[1], [0], [0], [1], [0, 0, 1, 1], [], []>} : vector<16x32xf32>, vector<32x16xf32>, vector<16x16xf32> -> vector<16x16xf32>
    %c2 = arith.constant 2 : index
    %c0_24 = arith.constant 0 : index
    %c0_25 = arith.constant 0 : index
    %20 = vector.load %arg2[%c2, %c0_24, %c0_25] : memref<4x32x16xf32, #tpu.memory_space<vmem>>, vector<1x32x16xf32>
    %21 = vector.shape_cast %20 : vector<1x32x16xf32> to vector<32x16xf32>
    %cst_26 = arith.constant dense<0.000000e+00> : vector<16x16xf32>
    %22 = tpu.matmul %1, %21, %cst_26 {dimension_numbers = #tpu.dot_dimension_numbers<[1], [0], [0], [1], [0, 0, 1, 1], [], []>} : vector<16x32xf32>, vector<32x16xf32>, vector<16x16xf32> -> vector<16x16xf32>
    %c2_27 = arith.constant 2 : index
    %c0_28 = arith.constant 0 : index
    %c0_29 = arith.constant 0 : index
    %23 = vector.load %arg3[%c2_27, %c0_28, %c0_29] : memref<4x32x16xf32, #tpu.memory_space<vmem>>, vector<1x32x16xf32>
    %24 = vector.shape_cast %23 : vector<1x32x16xf32> to vector<32x16xf32>
    %cst_30 = arith.constant dense<0.000000e+00> : vector<16x16xf32>
    %25 = tpu.matmul %1, %24, %cst_30 {dimension_numbers = #tpu.dot_dimension_numbers<[1], [0], [0], [1], [0, 0, 1, 1], [], []>} : vector<16x32xf32>, vector<32x16xf32>, vector<16x16xf32> -> vector<16x16xf32>
    %c2_31 = arith.constant 2 : index
    %c0_32 = arith.constant 0 : index
    %c0_33 = arith.constant 0 : index
    %26 = vector.load %arg4[%c2_31, %c0_32, %c0_33] : memref<4x32x16xf32, #tpu.memory_space<vmem>>, vector<1x32x16xf32>
    %27 = vector.shape_cast %26 : vector<1x32x16xf32> to vector<32x16xf32>
    %cst_34 = arith.constant dense<0.000000e+00> : vector<16x16xf32>
    %28 = tpu.matmul %1, %27, %cst_34 {dimension_numbers = #tpu.dot_dimension_numbers<[1], [0], [0], [1], [0, 0, 1, 1], [], []>} : vector<16x32xf32>, vector<32x16xf32>, vector<16x16xf32> -> vector<16x16xf32>
    %c3 = arith.constant 3 : index
    %c0_35 = arith.constant 0 : index
    %c0_36 = arith.constant 0 : index
    %29 = vector.load %arg2[%c3, %c0_35, %c0_36] : memref<4x32x16xf32, #tpu.memory_space<vmem>>, vector<1x32x16xf32>
    %30 = vector.shape_cast %29 : vector<1x32x16xf32> to vector<32x16xf32>
    %cst_37 = arith.constant dense<0.000000e+00> : vector<16x16xf32>
    %31 = tpu.matmul %1, %30, %cst_37 {dimension_numbers = #tpu.dot_dimension_numbers<[1], [0], [0], [1], [0, 0, 1, 1], [], []>} : vector<16x32xf32>, vector<32x16xf32>, vector<16x16xf32> -> vector<16x16xf32>
    %c3_38 = arith.constant 3 : index
    %c0_39 = arith.constant 0 : index
    %c0_40 = arith.constant 0 : index
    %32 = vector.load %arg3[%c3_38, %c0_39, %c0_40] : memref<4x32x16xf32, #tpu.memory_space<vmem>>, vector<1x32x16xf32>
    %33 = vector.shape_cast %32 : vector<1x32x16xf32> to vector<32x16xf32>
    %cst_41 = arith.constant dense<0.000000e+00> : vector<16x16xf32>
    %34 = tpu.matmul %1, %33, %cst_41 {dimension_numbers = #tpu.dot_dimension_numbers<[1], [0], [0], [1], [0, 0, 1, 1], [], []>} : vector<16x32xf32>, vector<32x16xf32>, vector<16x16xf32> -> vector<16x16xf32>
    %c3_42 = arith.constant 3 : index
    %c0_43 = arith.constant 0 : index
    %c0_44 = arith.constant 0 : index
    %35 = vector.load %arg4[%c3_42, %c0_43, %c0_44] : memref<4x32x16xf32, #tpu.memory_space<vmem>>, vector<1x32x16xf32>
    %36 = vector.shape_cast %35 : vector<1x32x16xf32> to vector<32x16xf32>
    %cst_45 = arith.constant dense<0.000000e+00> : vector<16x16xf32>
    %37 = tpu.matmul %1, %36, %cst_45 {dimension_numbers = #tpu.dot_dimension_numbers<[1], [0], [0], [1], [0, 0, 1, 1], [], []>} : vector<16x32xf32>, vector<32x16xf32>, vector<16x16xf32> -> vector<16x16xf32>
    %c0_46 = arith.constant 0 : index
    %c0_47 = arith.constant 0 : index
    %38 = vector.load %arg6[%c0_46, %c0_47] : memref<1x32xf32, #tpu.memory_space<vmem>>, vector<1x32xf32>
    %cst_48 = arith.constant 0.000000e+00 : f32
    %39 = vector.broadcast %cst_48 : f32 to vector<8x32xf32>
    %40 = vector.extract_strided_slice %4 {offsets = [0, 0], sizes = [8, 16], strides = [1, 1]} : vector<16x16xf32> to vector<8x16xf32>
    %41 = vector.extract_strided_slice %7 {offsets = [0, 0], sizes = [8, 16], strides = [1, 1]} : vector<16x16xf32> to vector<8x16xf32>
    %42 = vector.extract_strided_slice %10 {offsets = [0, 0], sizes = [8, 16], strides = [1, 1]} : vector<16x16xf32> to vector<8x16xf32>
    %cst_49 = arith.constant dense<0.000000e+00> : vector<8x8xf32>
    %43 = tpu.matmul %40, %41, %cst_49 {dimension_numbers = #tpu.dot_dimension_numbers<[1], [1], [0], [0], [0, 0, 1, 0], [], []>} : vector<8x16xf32>, vector<8x16xf32>, vector<8x8xf32> -> vector<8x8xf32>
    %cst_50 = arith.constant dense<0xFF800000> : vector<8xf32>
    %44 = vector.multi_reduction <maximumf>, %43, %cst_50 [1] : vector<8x8xf32> to vector<8xf32>
    %45 = vector.shape_cast %44 : vector<8xf32> to vector<8x1xf32>
    %46 = vector.broadcast %45 : vector<8x1xf32> to vector<8x8xf32>
    %47 = arith.subf %43, %46 : vector<8x8xf32>
    %48 = math.exp %47 : vector<8x8xf32>
    %cst_51 = arith.constant dense<0.000000e+00> : vector<8xf32>
    %49 = vector.multi_reduction <add>, %48, %cst_51 [1] : vector<8x8xf32> to vector<8xf32>
    %50 = vector.shape_cast %49 : vector<8xf32> to vector<8x1xf32>
    %cst_52 = arith.constant dense<0.000000e+00> : vector<8x16xf32>
    %51 = tpu.matmul %48, %42, %cst_52 {dimension_numbers = #tpu.dot_dimension_numbers<[1], [0], [0], [1], [0, 0, 1, 1], [], []>} : vector<8x8xf32>, vector<8x16xf32>, vector<8x16xf32> -> vector<8x16xf32>
    %52 = tpu.reciprocal %50 {approx = true} : vector<8x1xf32> -> vector<8x1xf32>
    %53 = vector.broadcast %52 : vector<8x1xf32> to vector<8x16xf32>
    %54 = arith.mulf %51, %53 : vector<8x16xf32>
    %c0_53 = arith.constant 0 : index
    %c0_54 = arith.constant 0 : index
    %c0_55 = arith.constant 0 : index
    %55 = vector.load %arg5[%c0_53, %c0_54, %c0_55] : memref<4x16x32xf32, #tpu.memory_space<vmem>>, vector<1x16x32xf32>
    %56 = vector.shape_cast %55 : vector<1x16x32xf32> to vector<16x32xf32>
    %cst_56 = arith.constant dense<0.000000e+00> : vector<8x32xf32>
    %57 = tpu.matmul %54, %56, %cst_56 {dimension_numbers = #tpu.dot_dimension_numbers<[1], [0], [0], [1], [0, 0, 1, 1], [], []>} : vector<8x16xf32>, vector<16x32xf32>, vector<8x32xf32> -> vector<8x32xf32>
    %58 = arith.addf %39, %57 : vector<8x32xf32>
    %59 = vector.extract_strided_slice %13 {offsets = [0, 0], sizes = [8, 16], strides = [1, 1]} : vector<16x16xf32> to vector<8x16xf32>
    %60 = vector.extract_strided_slice %16 {offsets = [0, 0], sizes = [8, 16], strides = [1, 1]} : vector<16x16xf32> to vector<8x16xf32>
    %61 = vector.extract_strided_slice %19 {offsets = [0, 0], sizes = [8, 16], strides = [1, 1]} : vector<16x16xf32> to vector<8x16xf32>
    %cst_57 = arith.constant dense<0.000000e+00> : vector<8x8xf32>
    %62 = tpu.matmul %59, %60, %cst_57 {dimension_numbers = #tpu.dot_dimension_numbers<[1], [1], [0], [0], [0, 0, 1, 0], [], []>} : vector<8x16xf32>, vector<8x16xf32>, vector<8x8xf32> -> vector<8x8xf32>
    %cst_58 = arith.constant dense<0xFF800000> : vector<8xf32>
    %63 = vector.multi_reduction <maximumf>, %62, %cst_58 [1] : vector<8x8xf32> to vector<8xf32>
    %64 = vector.shape_cast %63 : vector<8xf32> to vector<8x1xf32>
    %65 = vector.broadcast %64 : vector<8x1xf32> to vector<8x8xf32>
    %66 = arith.subf %62, %65 : vector<8x8xf32>
    %67 = math.exp %66 : vector<8x8xf32>
    %cst_59 = arith.constant dense<0.000000e+00> : vector<8xf32>
    %68 = vector.multi_reduction <add>, %67, %cst_59 [1] : vector<8x8xf32> to vector<8xf32>
    %69 = vector.shape_cast %68 : vector<8xf32> to vector<8x1xf32>
    %cst_60 = arith.constant dense<0.000000e+00> : vector<8x16xf32>
    %70 = tpu.matmul %67, %61, %cst_60 {dimension_numbers = #tpu.dot_dimension_numbers<[1], [0], [0], [1], [0, 0, 1, 1], [], []>} : vector<8x8xf32>, vector<8x16xf32>, vector<8x16xf32> -> vector<8x16xf32>
    %71 = tpu.reciprocal %69 {approx = true} : vector<8x1xf32> -> vector<8x1xf32>
    %72 = vector.broadcast %71 : vector<8x1xf32> to vector<8x16xf32>
    %73 = arith.mulf %70, %72 : vector<8x16xf32>
    %c1_61 = arith.constant 1 : index
    %c0_62 = arith.constant 0 : index
    %c0_63 = arith.constant 0 : index
    %74 = vector.load %arg5[%c1_61, %c0_62, %c0_63] : memref<4x16x32xf32, #tpu.memory_space<vmem>>, vector<1x16x32xf32>
    %75 = vector.shape_cast %74 : vector<1x16x32xf32> to vector<16x32xf32>
    %cst_64 = arith.constant dense<0.000000e+00> : vector<8x32xf32>
    %76 = tpu.matmul %73, %75, %cst_64 {dimension_numbers = #tpu.dot_dimension_numbers<[1], [0], [0], [1], [0, 0, 1, 1], [], []>} : vector<8x16xf32>, vector<16x32xf32>, vector<8x32xf32> -> vector<8x32xf32>
    %77 = arith.addf %58, %76 : vector<8x32xf32>
    %78 = vector.extract_strided_slice %22 {offsets = [0, 0], sizes = [8, 16], strides = [1, 1]} : vector<16x16xf32> to vector<8x16xf32>
    %79 = vector.extract_strided_slice %25 {offsets = [0, 0], sizes = [8, 16], strides = [1, 1]} : vector<16x16xf32> to vector<8x16xf32>
    %80 = vector.extract_strided_slice %28 {offsets = [0, 0], sizes = [8, 16], strides = [1, 1]} : vector<16x16xf32> to vector<8x16xf32>
    %cst_65 = arith.constant dense<0.000000e+00> : vector<8x8xf32>
    %81 = tpu.matmul %78, %79, %cst_65 {dimension_numbers = #tpu.dot_dimension_numbers<[1], [1], [0], [0], [0, 0, 1, 0], [], []>} : vector<8x16xf32>, vector<8x16xf32>, vector<8x8xf32> -> vector<8x8xf32>
    %cst_66 = arith.constant dense<0xFF800000> : vector<8xf32>
    %82 = vector.multi_reduction <maximumf>, %81, %cst_66 [1] : vector<8x8xf32> to vector<8xf32>
    %83 = vector.shape_cast %82 : vector<8xf32> to vector<8x1xf32>
    %84 = vector.broadcast %83 : vector<8x1xf32> to vector<8x8xf32>
    %85 = arith.subf %81, %84 : vector<8x8xf32>
    %86 = math.exp %85 : vector<8x8xf32>
    %cst_67 = arith.constant dense<0.000000e+00> : vector<8xf32>
    %87 = vector.multi_reduction <add>, %86, %cst_67 [1] : vector<8x8xf32> to vector<8xf32>
    %88 = vector.shape_cast %87 : vector<8xf32> to vector<8x1xf32>
    %cst_68 = arith.constant dense<0.000000e+00> : vector<8x16xf32>
    %89 = tpu.matmul %86, %80, %cst_68 {dimension_numbers = #tpu.dot_dimension_numbers<[1], [0], [0], [1], [0, 0, 1, 1], [], []>} : vector<8x8xf32>, vector<8x16xf32>, vector<8x16xf32> -> vector<8x16xf32>
    %90 = tpu.reciprocal %88 {approx = true} : vector<8x1xf32> -> vector<8x1xf32>
    %91 = vector.broadcast %90 : vector<8x1xf32> to vector<8x16xf32>
    %92 = arith.mulf %89, %91 : vector<8x16xf32>
    %c2_69 = arith.constant 2 : index
    %c0_70 = arith.constant 0 : index
    %c0_71 = arith.constant 0 : index
    %93 = vector.load %arg5[%c2_69, %c0_70, %c0_71] : memref<4x16x32xf32, #tpu.memory_space<vmem>>, vector<1x16x32xf32>
    %94 = vector.shape_cast %93 : vector<1x16x32xf32> to vector<16x32xf32>
    %cst_72 = arith.constant dense<0.000000e+00> : vector<8x32xf32>
    %95 = tpu.matmul %92, %94, %cst_72 {dimension_numbers = #tpu.dot_dimension_numbers<[1], [0], [0], [1], [0, 0, 1, 1], [], []>} : vector<8x16xf32>, vector<16x32xf32>, vector<8x32xf32> -> vector<8x32xf32>
    %96 = arith.addf %77, %95 : vector<8x32xf32>
    %97 = vector.extract_strided_slice %31 {offsets = [0, 0], sizes = [8, 16], strides = [1, 1]} : vector<16x16xf32> to vector<8x16xf32>
    %98 = vector.extract_strided_slice %34 {offsets = [0, 0], sizes = [8, 16], strides = [1, 1]} : vector<16x16xf32> to vector<8x16xf32>
    %99 = vector.extract_strided_slice %37 {offsets = [0, 0], sizes = [8, 16], strides = [1, 1]} : vector<16x16xf32> to vector<8x16xf32>
    %cst_73 = arith.constant dense<0.000000e+00> : vector<8x8xf32>
    %100 = tpu.matmul %97, %98, %cst_73 {dimension_numbers = #tpu.dot_dimension_numbers<[1], [1], [0], [0], [0, 0, 1, 0], [], []>} : vector<8x16xf32>, vector<8x16xf32>, vector<8x8xf32> -> vector<8x8xf32>
    %cst_74 = arith.constant dense<0xFF800000> : vector<8xf32>
    %101 = vector.multi_reduction <maximumf>, %100, %cst_74 [1] : vector<8x8xf32> to vector<8xf32>
    %102 = vector.shape_cast %101 : vector<8xf32> to vector<8x1xf32>
    %103 = vector.broadcast %102 : vector<8x1xf32> to vector<8x8xf32>
    %104 = arith.subf %100, %103 : vector<8x8xf32>
    %105 = math.exp %104 : vector<8x8xf32>
    %cst_75 = arith.constant dense<0.000000e+00> : vector<8xf32>
    %106 = vector.multi_reduction <add>, %105, %cst_75 [1] : vector<8x8xf32> to vector<8xf32>
    %107 = vector.shape_cast %106 : vector<8xf32> to vector<8x1xf32>
    %cst_76 = arith.constant dense<0.000000e+00> : vector<8x16xf32>
    %108 = tpu.matmul %105, %99, %cst_76 {dimension_numbers = #tpu.dot_dimension_numbers<[1], [0], [0], [1], [0, 0, 1, 1], [], []>} : vector<8x8xf32>, vector<8x16xf32>, vector<8x16xf32> -> vector<8x16xf32>
    %109 = tpu.reciprocal %107 {approx = true} : vector<8x1xf32> -> vector<8x1xf32>
    %110 = vector.broadcast %109 : vector<8x1xf32> to vector<8x16xf32>
    %111 = arith.mulf %108, %110 : vector<8x16xf32>
    %c3_77 = arith.constant 3 : index
    %c0_78 = arith.constant 0 : index
    %c0_79 = arith.constant 0 : index
    %112 = vector.load %arg5[%c3_77, %c0_78, %c0_79] : memref<4x16x32xf32, #tpu.memory_space<vmem>>, vector<1x16x32xf32>
    %113 = vector.shape_cast %112 : vector<1x16x32xf32> to vector<16x32xf32>
    %cst_80 = arith.constant dense<0.000000e+00> : vector<8x32xf32>
    %114 = tpu.matmul %111, %113, %cst_80 {dimension_numbers = #tpu.dot_dimension_numbers<[1], [0], [0], [1], [0, 0, 1, 1], [], []>} : vector<8x16xf32>, vector<16x32xf32>, vector<8x32xf32> -> vector<8x32xf32>
    %115 = arith.addf %96, %114 : vector<8x32xf32>
    %116 = vector.broadcast %38 : vector<1x32xf32> to vector<8x32xf32>
    %117 = arith.addf %115, %116 : vector<8x32xf32>
    %c0_81 = arith.constant 0 : index
    %c0_82 = arith.constant 0 : index
    %c0_83 = arith.constant 0 : index
    %118 = vector.load %arg7[%c0_81, %c0_82, %c0_83] : memref<2x8x32xf32, #tpu.memory_space<vmem>>, vector<1x8x32xf32>
    %119 = vector.shape_cast %118 : vector<1x8x32xf32> to vector<8x32xf32>
    %120 = vector.shape_cast %117 : vector<8x32xf32> to vector<1x8x32xf32>
    tpu.vector_store %arg7[%c0_81, %c0_82, %c0_83], %120 {strides = array<i32>} : memref<2x8x32xf32, #tpu.memory_space<vmem>>, vector<1x8x32xf32>,
    %cst_84 = arith.constant 0.000000e+00 : f32
    %121 = vector.broadcast %cst_84 : f32 to vector<8x32xf32>
    %122 = vector.extract_strided_slice %4 {offsets = [8, 0], sizes = [8, 16], strides = [1, 1]} : vector<16x16xf32> to vector<8x16xf32>
    %123 = vector.extract_strided_slice %7 {offsets = [8, 0], sizes = [8, 16], strides = [1, 1]} : vector<16x16xf32> to vector<8x16xf32>
    %124 = vector.extract_strided_slice %10 {offsets = [8, 0], sizes = [8, 16], strides = [1, 1]} : vector<16x16xf32> to vector<8x16xf32>
    %cst_85 = arith.constant dense<0.000000e+00> : vector<8x8xf32>
    %125 = tpu.matmul %122, %123, %cst_85 {dimension_numbers = #tpu.dot_dimension_numbers<[1], [1], [0], [0], [0, 0, 1, 0], [], []>} : vector<8x16xf32>, vector<8x16xf32>, vector<8x8xf32> -> vector<8x8xf32>
    %cst_86 = arith.constant dense<0xFF800000> : vector<8xf32>
    %126 = vector.multi_reduction <maximumf>, %125, %cst_86 [1] : vector<8x8xf32> to vector<8xf32>
    %127 = vector.shape_cast %126 : vector<8xf32> to vector<8x1xf32>
    %128 = vector.broadcast %127 : vector<8x1xf32> to vector<8x8xf32>
    %129 = arith.subf %125, %128 : vector<8x8xf32>
    %130 = math.exp %129 : vector<8x8xf32>
    %cst_87 = arith.constant dense<0.000000e+00> : vector<8xf32>
    %131 = vector.multi_reduction <add>, %130, %cst_87 [1] : vector<8x8xf32> to vector<8xf32>
    %132 = vector.shape_cast %131 : vector<8xf32> to vector<8x1xf32>
    %cst_88 = arith.constant dense<0.000000e+00> : vector<8x16xf32>
    %133 = tpu.matmul %130, %124, %cst_88 {dimension_numbers = #tpu.dot_dimension_numbers<[1], [0], [0], [1], [0, 0, 1, 1], [], []>} : vector<8x8xf32>, vector<8x16xf32>, vector<8x16xf32> -> vector<8x16xf32>
    %134 = tpu.reciprocal %132 {approx = true} : vector<8x1xf32> -> vector<8x1xf32>
    %135 = vector.broadcast %134 : vector<8x1xf32> to vector<8x16xf32>
    %136 = arith.mulf %133, %135 : vector<8x16xf32>
    %c0_89 = arith.constant 0 : index
    %c0_90 = arith.constant 0 : index
    %c0_91 = arith.constant 0 : index
    %137 = vector.load %arg5[%c0_89, %c0_90, %c0_91] : memref<4x16x32xf32, #tpu.memory_space<vmem>>, vector<1x16x32xf32>
    %138 = vector.shape_cast %137 : vector<1x16x32xf32> to vector<16x32xf32>
    %cst_92 = arith.constant dense<0.000000e+00> : vector<8x32xf32>
    %139 = tpu.matmul %136, %138, %cst_92 {dimension_numbers = #tpu.dot_dimension_numbers<[1], [0], [0], [1], [0, 0, 1, 1], [], []>} : vector<8x16xf32>, vector<16x32xf32>, vector<8x32xf32> -> vector<8x32xf32>
    %140 = arith.addf %121, %139 : vector<8x32xf32>
    %141 = vector.extract_strided_slice %13 {offsets = [8, 0], sizes = [8, 16], strides = [1, 1]} : vector<16x16xf32> to vector<8x16xf32>
    %142 = vector.extract_strided_slice %16 {offsets = [8, 0], sizes = [8, 16], strides = [1, 1]} : vector<16x16xf32> to vector<8x16xf32>
    %143 = vector.extract_strided_slice %19 {offsets = [8, 0], sizes = [8, 16], strides = [1, 1]} : vector<16x16xf32> to vector<8x16xf32>
    %cst_93 = arith.constant dense<0.000000e+00> : vector<8x8xf32>
    %144 = tpu.matmul %141, %142, %cst_93 {dimension_numbers = #tpu.dot_dimension_numbers<[1], [1], [0], [0], [0, 0, 1, 0], [], []>} : vector<8x16xf32>, vector<8x16xf32>, vector<8x8xf32> -> vector<8x8xf32>
    %cst_94 = arith.constant dense<0xFF800000> : vector<8xf32>
    %145 = vector.multi_reduction <maximumf>, %144, %cst_94 [1] : vector<8x8xf32> to vector<8xf32>
    %146 = vector.shape_cast %145 : vector<8xf32> to vector<8x1xf32>
    %147 = vector.broadcast %146 : vector<8x1xf32> to vector<8x8xf32>
    %148 = arith.subf %144, %147 : vector<8x8xf32>
    %149 = math.exp %148 : vector<8x8xf32>
    %cst_95 = arith.constant dense<0.000000e+00> : vector<8xf32>
    %150 = vector.multi_reduction <add>, %149, %cst_95 [1] : vector<8x8xf32> to vector<8xf32>
    %151 = vector.shape_cast %150 : vector<8xf32> to vector<8x1xf32>
    %cst_96 = arith.constant dense<0.000000e+00> : vector<8x16xf32>
    %152 = tpu.matmul %149, %143, %cst_96 {dimension_numbers = #tpu.dot_dimension_numbers<[1], [0], [0], [1], [0, 0, 1, 1], [], []>} : vector<8x8xf32>, vector<8x16xf32>, vector<8x16xf32> -> vector<8x16xf32>
    %153 = tpu.reciprocal %151 {approx = true} : vector<8x1xf32> -> vector<8x1xf32>
    %154 = vector.broadcast %153 : vector<8x1xf32> to vector<8x16xf32>
    %155 = arith.mulf %152, %154 : vector<8x16xf32>
    %c1_97 = arith.constant 1 : index
    %c0_98 = arith.constant 0 : index
    %c0_99 = arith.constant 0 : index
    %156 = vector.load %arg5[%c1_97, %c0_98, %c0_99] : memref<4x16x32xf32, #tpu.memory_space<vmem>>, vector<1x16x32xf32>
    %157 = vector.shape_cast %156 : vector<1x16x32xf32> to vector<16x32xf32>
    %cst_100 = arith.constant dense<0.000000e+00> : vector<8x32xf32>
    %158 = tpu.matmul %155, %157, %cst_100 {dimension_numbers = #tpu.dot_dimension_numbers<[1], [0], [0], [1], [0, 0, 1, 1], [], []>} : vector<8x16xf32>, vector<16x32xf32>, vector<8x32xf32> -> vector<8x32xf32>
    %159 = arith.addf %140, %158 : vector<8x32xf32>
    %160 = vector.extract_strided_slice %22 {offsets = [8, 0], sizes = [8, 16], strides = [1, 1]} : vector<16x16xf32> to vector<8x16xf32>
    %161 = vector.extract_strided_slice %25 {offsets = [8, 0], sizes = [8, 16], strides = [1, 1]} : vector<16x16xf32> to vector<8x16xf32>
    %162 = vector.extract_strided_slice %28 {offsets = [8, 0], sizes = [8, 16], strides = [1, 1]} : vector<16x16xf32> to vector<8x16xf32>
    %cst_101 = arith.constant dense<0.000000e+00> : vector<8x8xf32>
    %163 = tpu.matmul %160, %161, %cst_101 {dimension_numbers = #tpu.dot_dimension_numbers<[1], [1], [0], [0], [0, 0, 1, 0], [], []>} : vector<8x16xf32>, vector<8x16xf32>, vector<8x8xf32> -> vector<8x8xf32>
    %cst_102 = arith.constant dense<0xFF800000> : vector<8xf32>
    %164 = vector.multi_reduction <maximumf>, %163, %cst_102 [1] : vector<8x8xf32> to vector<8xf32>
    %165 = vector.shape_cast %164 : vector<8xf32> to vector<8x1xf32>
    %166 = vector.broadcast %165 : vector<8x1xf32> to vector<8x8xf32>
    %167 = arith.subf %163, %166 : vector<8x8xf32>
    %168 = math.exp %167 : vector<8x8xf32>
    %cst_103 = arith.constant dense<0.000000e+00> : vector<8xf32>
    %169 = vector.multi_reduction <add>, %168, %cst_103 [1] : vector<8x8xf32> to vector<8xf32>
    %170 = vector.shape_cast %169 : vector<8xf32> to vector<8x1xf32>
    %cst_104 = arith.constant dense<0.000000e+00> : vector<8x16xf32>
    %171 = tpu.matmul %168, %162, %cst_104 {dimension_numbers = #tpu.dot_dimension_numbers<[1], [0], [0], [1], [0, 0, 1, 1], [], []>} : vector<8x8xf32>, vector<8x16xf32>, vector<8x16xf32> -> vector<8x16xf32>
    %172 = tpu.reciprocal %170 {approx = true} : vector<8x1xf32> -> vector<8x1xf32>
    %173 = vector.broadcast %172 : vector<8x1xf32> to vector<8x16xf32>
    %174 = arith.mulf %171, %173 : vector<8x16xf32>
    %c2_105 = arith.constant 2 : index
    %c0_106 = arith.constant 0 : index
    %c0_107 = arith.constant 0 : index
    %175 = vector.load %arg5[%c2_105, %c0_106, %c0_107] : memref<4x16x32xf32, #tpu.memory_space<vmem>>, vector<1x16x32xf32>
    %176 = vector.shape_cast %175 : vector<1x16x32xf32> to vector<16x32xf32>
    %cst_108 = arith.constant dense<0.000000e+00> : vector<8x32xf32>
    %177 = tpu.matmul %174, %176, %cst_108 {dimension_numbers = #tpu.dot_dimension_numbers<[1], [0], [0], [1], [0, 0, 1, 1], [], []>} : vector<8x16xf32>, vector<16x32xf32>, vector<8x32xf32> -> vector<8x32xf32>
    %178 = arith.addf %159, %177 : vector<8x32xf32>
    %179 = vector.extract_strided_slice %31 {offsets = [8, 0], sizes = [8, 16], strides = [1, 1]} : vector<16x16xf32> to vector<8x16xf32>
    %180 = vector.extract_strided_slice %34 {offsets = [8, 0], sizes = [8, 16], strides = [1, 1]} : vector<16x16xf32> to vector<8x16xf32>
    %181 = vector.extract_strided_slice %37 {offsets = [8, 0], sizes = [8, 16], strides = [1, 1]} : vector<16x16xf32> to vector<8x16xf32>
    %cst_109 = arith.constant dense<0.000000e+00> : vector<8x8xf32>
    %182 = tpu.matmul %179, %180, %cst_109 {dimension_numbers = #tpu.dot_dimension_numbers<[1], [1], [0], [0], [0, 0, 1, 0], [], []>} : vector<8x16xf32>, vector<8x16xf32>, vector<8x8xf32> -> vector<8x8xf32>
    %cst_110 = arith.constant dense<0xFF800000> : vector<8xf32>
    %183 = vector.multi_reduction <maximumf>, %182, %cst_110 [1] : vector<8x8xf32> to vector<8xf32>
    %184 = vector.shape_cast %183 : vector<8xf32> to vector<8x1xf32>
    %185 = vector.broadcast %184 : vector<8x1xf32> to vector<8x8xf32>
    %186 = arith.subf %182, %185 : vector<8x8xf32>
    %187 = math.exp %186 : vector<8x8xf32>
    %cst_111 = arith.constant dense<0.000000e+00> : vector<8xf32>
    %188 = vector.multi_reduction <add>, %187, %cst_111 [1] : vector<8x8xf32> to vector<8xf32>
    %189 = vector.shape_cast %188 : vector<8xf32> to vector<8x1xf32>
    %cst_112 = arith.constant dense<0.000000e+00> : vector<8x16xf32>
    %190 = tpu.matmul %187, %181, %cst_112 {dimension_numbers = #tpu.dot_dimension_numbers<[1], [0], [0], [1], [0, 0, 1, 1], [], []>} : vector<8x8xf32>, vector<8x16xf32>, vector<8x16xf32> -> vector<8x16xf32>
    %191 = tpu.reciprocal %189 {approx = true} : vector<8x1xf32> -> vector<8x1xf32>
    %192 = vector.broadcast %191 : vector<8x1xf32> to vector<8x16xf32>
    %193 = arith.mulf %190, %192 : vector<8x16xf32>
    %c3_113 = arith.constant 3 : index
    %c0_114 = arith.constant 0 : index
    %c0_115 = arith.constant 0 : index
    %194 = vector.load %arg5[%c3_113, %c0_114, %c0_115] : memref<4x16x32xf32, #tpu.memory_space<vmem>>, vector<1x16x32xf32>
    %195 = vector.shape_cast %194 : vector<1x16x32xf32> to vector<16x32xf32>
    %cst_116 = arith.constant dense<0.000000e+00> : vector<8x32xf32>
    %196 = tpu.matmul %193, %195, %cst_116 {dimension_numbers = #tpu.dot_dimension_numbers<[1], [0], [0], [1], [0, 0, 1, 1], [], []>} : vector<8x16xf32>, vector<16x32xf32>, vector<8x32xf32> -> vector<8x32xf32>
    %197 = arith.addf %178, %196 : vector<8x32xf32>
    %198 = vector.broadcast %38 : vector<1x32xf32> to vector<8x32xf32>
    %199 = arith.addf %197, %198 : vector<8x32xf32>
    %c1_117 = arith.constant 1 : index
    %c0_118 = arith.constant 0 : index
    %c0_119 = arith.constant 0 : index
    %200 = vector.load %arg7[%c1_117, %c0_118, %c0_119] : memref<2x8x32xf32, #tpu.memory_space<vmem>>, vector<1x8x32xf32>
    %201 = vector.shape_cast %200 : vector<1x8x32xf32> to vector<8x32xf32>
    %202 = vector.shape_cast %199 : vector<8x32xf32> to vector<1x8x32xf32>
    tpu.vector_store %arg7[%c1_117, %c0_118, %c0_119], %202 {strides = array<i32>} : memref<2x8x32xf32, #tpu.memory_space<vmem>>, vector<1x8x32xf32>,
    return
  }
  func.func @transform_0(%arg0: i32) -> (i32, i32, i32) {
    %c0_i32 = arith.constant 0 : i32
    %c0_i32_0 = arith.constant 0 : i32
    %c0_i32_1 = arith.constant 0 : i32
    return %arg0, %c0_i32, %c0_i32_0 : i32, i32, i32
  }
  func.func @transform_1(%arg0: i32) -> (i32, i32, i32) {
    %c0_i32 = arith.constant 0 : i32
    %c0_i32_0 = arith.constant 0 : i32
    %c0_i32_1 = arith.constant 0 : i32
    %c0_i32_2 = arith.constant 0 : i32
    return %c0_i32, %c0_i32_0, %c0_i32_1 : i32, i32, i32
  }
  func.func @transform_2(%arg0: i32) -> (i32, i32, i32) {
    %c0_i32 = arith.constant 0 : i32
    %c0_i32_0 = arith.constant 0 : i32
    %c0_i32_1 = arith.constant 0 : i32
    %c0_i32_2 = arith.constant 0 : i32
    return %c0_i32, %c0_i32_0, %c0_i32_1 : i32, i32, i32
  }
  func.func @transform_3(%arg0: i32) -> (i32, i32, i32) {
    %c0_i32 = arith.constant 0 : i32
    %c0_i32_0 = arith.constant 0 : i32
    %c0_i32_1 = arith.constant 0 : i32
    %c0_i32_2 = arith.constant 0 : i32
    return %c0_i32, %c0_i32_0, %c0_i32_1 : i32, i32, i32
  }
  func.func @transform_4(%arg0: i32) -> (i32, i32, i32) {
    %c0_i32 = arith.constant 0 : i32
    %c0_i32_0 = arith.constant 0 : i32
    %c0_i32_1 = arith.constant 0 : i32
    %c0_i32_2 = arith.constant 0 : i32
    return %c0_i32, %c0_i32_0, %c0_i32_1 : i32, i32, i32
  }
  func.func @transform_5(%arg0: i32) -> (i32, i32) {
    %c0_i32 = arith.constant 0 : i32
    %c0_i32_0 = arith.constant 0 : i32
    %c0_i32_1 = arith.constant 0 : i32
    return %c0_i32, %c0_i32_0 : i32, i32
  }
  func.func @transform_6(%arg0: i32) -> (i32, i32, i32) {
    %c0_i32 = arith.constant 0 : i32
    %c0_i32_0 = arith.constant 0 : i32
    %c0_i32_1 = arith.constant 0 : i32
    return %arg0, %c0_i32, %c0_i32_0 : i32, i32, i32
  }
}

</mosaic_0001>

<llo_original>
// kernel: tpu_custom_call.1
$region0: #{tpu_custom_call.1}
  #allocation0 [shape = 'u32[]', space=smem, size = 0x4, offset = 0x4, fixed_abs, tag = 'smem constant byte address 0x4 - core index']
  #allocation1 [shape = 'u32[72,128]{1,0:T(1,128)}', space=vmem, size = 0x9000, scoped, tag = 'internal scratch']
  %s0 = inlined_call_operand.vmem [shape: f32[2,8,32], index: 0, kind: input, shape index: {}]
  %s1 = inlined_call_operand.vmem [shape: f32[4,32,16], index: 1, kind: input, shape index: {}]
  %s2 = inlined_call_operand.vmem [shape: f32[4,32,16], index: 2, kind: input, shape index: {}]
  %s3 = inlined_call_operand.vmem [shape: f32[4,32,16], index: 3, kind: input, shape index: {}]
  %s4 = inlined_call_operand.vmem [shape: f32[4,16,32], index: 4, kind: input, shape index: {}]
  %s5 = inlined_call_operand.vmem [shape: f32[1,32], index: 5, kind: input, shape index: {}]
  %s6 = inlined_call_operand.hbm [shape: f32[2,8,32], index: 6, kind: output, shape index: {}]
  %s7 = sld [smem:[#allocation0]]
  $region34: #{tpu_custom_call.1} parent=0
    _
  %s9 = ssub.s32 1, %s7
  %s10 = scalar_select 0, %s9, %s7
  $region1: #{tpu_custom_call.1} parent=0
    #allocation2 [shape = 'u8[8192]{0}', space=vmem, size = 0x2000, scoped, tag = 'output window, operand 0, single buffered']
    #allocation3 [shape = 's32[1]{0}', space=sflag, size = 0x4, scoped, tag = 'scoped memory for tpu_custom_call.1']
    %11 = vsyncpa [#allocation3], 0
    // Predicated region
    $region2: #{tpu_custom_call.1} parent=1 // pred_check
      _
    $region3: #{tpu_custom_call.1} parent=1 // pred_check_branch
      %13 = sbr.rel (0) target = $region5
    $region4: #{tpu_custom_call.1} parent=1 // pred_region
      _
    $region5: #{tpu_custom_call.1} parent=1 // pred_fallthru
      _
    // Predicated region
    $region6: #{tpu_custom_call.1} parent=1 // pred_check
      _
    $region7: #{tpu_custom_call.1} parent=1 // pred_check_branch
      %15 = sbr.rel (0) target = $region9
    $region8: #{tpu_custom_call.1} parent=1 // pred_region
      _
    $region9: #{tpu_custom_call.1} parent=1 // pred_fallthru
      _
    // Predicated region
    $region10: #{tpu_custom_call.1} parent=1 // pred_check
      _
    $region11: #{tpu_custom_call.1} parent=1 // pred_check_branch
      %17 = sbr.rel (0) target = $region13
    $region12: #{tpu_custom_call.1} parent=1 // pred_region
      _
    $region13: #{tpu_custom_call.1} parent=1 // pred_fallthru
      _
    // Predicated region
    $region14: #{tpu_custom_call.1} parent=1 // pred_check
      _
    $region15: #{tpu_custom_call.1} parent=1 // pred_check_branch
      %19 = sbr.rel (0) target = $region17
    $region16: #{tpu_custom_call.1} parent=1 // pred_region
      _
    $region17: #{tpu_custom_call.1} parent=1 // pred_fallthru
      _
    // Predicated region
    $region18: #{tpu_custom_call.1} parent=1 // pred_check
      _
    $region19: #{tpu_custom_call.1} parent=1 // pred_check_branch
      %21 = sbr.rel (0) target = $region21
    $region20: #{tpu_custom_call.1} parent=1 // pred_region
      _
    $region21: #{tpu_custom_call.1} parent=1 // pred_fallthru
      _
    // Predicated region
    $region22: #{tpu_custom_call.1} parent=1 // pred_check
      _
    $region23: #{tpu_custom_call.1} parent=1 // pred_check_branch
      %23 = sbr.rel (0) target = $region25
    $region24: #{tpu_custom_call.1} parent=1 // pred_region
      _
    $region25: #{tpu_custom_call.1} parent=1 // pred_fallthru
      _
    %v24 = vld [vmem:[%s0] sm:$0xff]
    %v25 = vld [vmem:[%s0 + $0x8] sm:$0xff]
    %v26 = vld [vmem:[%s1] sm:$0xff]
    %v27 = vld [vmem:[%s1 + $0x8] sm:$0xff]
    %v28 = vld [vmem:[%s1 + $0x10] sm:$0xff]
    %v29 = vld [vmem:[%s1 + $0x18] sm:$0xff]
    %vm30 = vcmask 261120
    %v32 = vsel %vm30, %v24, 0
    %v35 = vsel %vm30, %v25, 0
    %37 = vmatpush.msra.mxu0 0.0
    %38 = vmatpush.msra.mxu0 0.0
    %39 = vmatpush.msra.mxu0 0.0
    %40 = vmatpush.msra.mxu0 0.0
    %41 = vmatpush.msra.mxu0 0.0
    %42 = vmatpush.msra.mxu0 0.0
    %43 = vmatpush.msra.mxu0 0.0
    %44 = vmatpush.msra.mxu0 0.0
    %45 = vmatpush.msra.mxu0 0.0
    %46 = vmatpush.msra.mxu0 0.0
    %47 = vmatpush.msra.mxu0 0.0
    %48 = vmatpush.msra.mxu0 0.0
    %49 = vmatpush.msra.mxu0 %v29
    %50 = vmatpush.msra.mxu0 %v28
    %51 = vmatpush.msra.mxu0 %v27
    %52 = vmatpush.msra.mxu0 %v26
    %53 = vmatmul.f32.gmra.mxu0 %v32
    %v54 = vpop.f32.mrf.mxu0
    %v55 = vadd.f32 0.0, %v54
    %56 = vmatmul.f32.gmra.mxu0 %v35
    %v57 = vpop.f32.mrf.mxu0
    %v58 = vadd.f32 0.0, %v57
    %59 = vdwg.mxu0
    %v60 = vld [vmem:[%s2] sm:$0xff]
    %v61 = vld [vmem:[%s2 + $0x8] sm:$0xff]
    %v62 = vld [vmem:[%s2 + $0x10] sm:$0xff]
    %v63 = vld [vmem:[%s2 + $0x18] sm:$0xff]
    %64 = vmatpush.msra.mxu0 0.0
    %65 = vmatpush.msra.mxu0 0.0
    %66 = vmatpush.msra.mxu0 0.0
    %67 = vmatpush.msra.mxu0 0.0
    %68 = vmatpush.msra.mxu0 0.0
    %69 = vmatpush.msra.mxu0 0.0
    %70 = vmatpush.msra.mxu0 0.0
    %71 = vmatpush.msra.mxu0 0.0
    %72 = vmatpush.msra.mxu0 0.0
    %73 = vmatpush.msra.mxu0 0.0
    %74 = vmatpush.msra.mxu0 0.0
    %75 = vmatpush.msra.mxu0 0.0
    %76 = vmatpush.msra.mxu0 %v63
    %77 = vmatpush.msra.mxu0 %v62
    %78 = vmatpush.msra.mxu0 %v61
    %79 = vmatpush.msra.mxu0 %v60
    %80 = vmatmul.f32.gmra.mxu0 %v32
    %v81 = vpop.f32.mrf.mxu0
    %v82 = vadd.f32 0.0, %v81
    %83 = vmatmul.f32.gmra.mxu0 %v35
    %v84 = vpop.f32.mrf.mxu0
    %v85 = vadd.f32 0.0, %v84
    %86 = vdwg.mxu0
    %v87 = vld [vmem:[%s3] sm:$0xff]
    %v88 = vld [vmem:[%s3 + $0x8] sm:$0xff]
    %v89 = vld [vmem:[%s3 + $0x10] sm:$0xff]
    %v90 = vld [vmem:[%s3 + $0x18] sm:$0xff]
    %91 = vmatpush.msra.mxu0 0.0
    %92 = vmatpush.msra.mxu0 0.0
    %93 = vmatpush.msra.mxu0 0.0
    %94 = vmatpush.msra.mxu0 0.0
    %95 = vmatpush.msra.mxu0 0.0
    %96 = vmatpush.msra.mxu0 0.0
    %97 = vmatpush.msra.mxu0 0.0
    %98 = vmatpush.msra.mxu0 0.0
    %99 = vmatpush.msra.mxu0 0.0
    %100 = vmatpush.msra.mxu0 0.0
    %101 = vmatpush.msra.mxu0 0.0
    %102 = vmatpush.msra.mxu0 0.0
    %103 = vmatpush.msra.mxu0 %v90
    %104 = vmatpush.msra.mxu0 %v89
    %105 = vmatpush.msra.mxu0 %v88
    %106 = vmatpush.msra.mxu0 %v87
    %107 = vmatmul.f32.gmra.mxu0 %v32
    %v108 = vpop.f32.mrf.mxu0
    %v109 = vadd.f32 0.0, %v108
    %110 = vmatmul.f32.gmra.mxu0 %v35
    %v111 = vpop.f32.mrf.mxu0
    %v112 = vadd.f32 0.0, %v111
    %113 = vdwg.mxu0
    %s114 = scalar_lea.vmem %s1, 32
    %v115 = vld [vmem:[%s114] sm:$0xff]
    %v116 = vld [vmem:[%s114 + $0x8] sm:$0xff]
    %v117 = vld [vmem:[%s114 + $0x10] sm:$0xff]
    %v118 = vld [vmem:[%s114 + $0x18] sm:$0xff]
    %119 = vmatpush.msra.mxu0 0.0
    %120 = vmatpush.msra.mxu0 0.0
    %121 = vmatpush.msra.mxu0 0.0
    %122 = vmatpush.msra.mxu0 0.0
    %123 = vmatpush.msra.mxu0 0.0
    %124 = vmatpush.msra.mxu0 0.0
    %125 = vmatpush.msra.mxu0 0.0
    %126 = vmatpush.msra.mxu0 0.0
    %127 = vmatpush.msra.mxu0 0.0
    %128 = vmatpush.msra.mxu0 0.0
    %129 = vmatpush.msra.mxu0 0.0
    %130 = vmatpush.msra.mxu0 0.0
    %131 = vmatpush.msra.mxu0 %v118
    %132 = vmatpush.msra.mxu0 %v117
    %133 = vmatpush.msra.mxu0 %v116
    %134 = vmatpush.msra.mxu0 %v115
    %135 = vmatmul.f32.gmra.mxu0 %v32
    %v136 = vpop.f32.mrf.mxu0
    %v137 = vadd.f32 0.0, %v136
    %138 = vmatmul.f32.gmra.mxu0 %v35
    %v139 = vpop.f32.mrf.mxu0
    %v140 = vadd.f32 0.0, %v139
    %141 = vdwg.mxu0
    %s142 = scalar_lea.vmem %s2, 32
    %v143 = vld [vmem:[%s142] sm:$0xff]
    %v144 = vld [vmem:[%s142 + $0x8] sm:$0xff]
    %v145 = vld [vmem:[%s142 + $0x10] sm:$0xff]
    %v146 = vld [vmem:[%s142 + $0x18] sm:$0xff]
    %147 = vmatpush.msra.mxu0 0.0
    %148 = vmatpush.msra.mxu0 0.0
    %149 = vmatpush.msra.mxu0 0.0
    %150 = vmatpush.msra.mxu0 0.0
    %151 = vmatpush.msra.mxu0 0.0
    %152 = vmatpush.msra.mxu0 0.0
    %153 = vmatpush.msra.mxu0 0.0
    %154 = vmatpush.msra.mxu0 0.0
    %155 = vmatpush.msra.mxu0 0.0
    %156 = vmatpush.msra.mxu0 0.0
    %157 = vmatpush.msra.mxu0 0.0
    %158 = vmatpush.msra.mxu0 0.0
    %159 = vmatpush.msra.mxu0 %v146
    %160 = vmatpush.msra.mxu0 %v145
    %161 = vmatpush.msra.mxu0 %v144
    %162 = vmatpush.msra.mxu0 %v143
    %163 = vmatmul.f32.gmra.mxu0 %v32
    %v164 = vpop.f32.mrf.mxu0
    %v165 = vadd.f32 0.0, %v164
    %166 = vmatmul.f32.gmra.mxu0 %v35
    %v167 = vpop.f32.mrf.mxu0
    %v168 = vadd.f32 0.0, %v167
    %169 = vdwg.mxu0
    %s170 = scalar_lea.vmem %s3, 32
    %v171 = vld [vmem:[%s170] sm:$0xff]
    %v172 = vld [vmem:[%s170 + $0x8] sm:$0xff]
    %v173 = vld [vmem:[%s170 + $0x10] sm:$0xff]
    %v174 = vld [vmem:[%s170 + $0x18] sm:$0xff]
    %175 = vmatpush.msra.mxu0 0.0
    %176 = vmatpush.msra.mxu0 0.0
    %177 = vmatpush.msra.mxu0 0.0
    %178 = vmatpush.msra.mxu0 0.0
    %179 = vmatpush.msra.mxu0 0.0
    %180 = vmatpush.msra.mxu0 0.0
    %181 = vmatpush.msra.mxu0 0.0
    %182 = vmatpush.msra.mxu0 0.0
    %183 = vmatpush.msra.mxu0 0.0
    %184 = vmatpush.msra.mxu0 0.0
    %185 = vmatpush.msra.mxu0 0.0
    %186 = vmatpush.msra.mxu0 0.0
    %187 = vmatpush.msra.mxu0 %v174
    %188 = vmatpush.msra.mxu0 %v173
    %189 = vmatpush.msra.mxu0 %v172
    %190 = vmatpush.msra.mxu0 %v171
    %191 = vmatmul.f32.gmra.mxu0 %v32
    %v192 = vpop.f32.mrf.mxu0
    %v193 = vadd.f32 0.0, %v192
    %194 = vmatmul.f32.gmra.mxu0 %v35
    %v195 = vpop.f32.mrf.mxu0
    %v196 = vadd.f32 0.0, %v195
    %197 = vdwg.mxu0
    %s198 = scalar_lea.vmem %s1, 64
    %v199 = vld [vmem:[%s198] sm:$0xff]
    %v200 = vld [vmem:[%s198 + $0x8] sm:$0xff]
    %v201 = vld [vmem:[%s198 + $0x10] sm:$0xff]
    %v202 = vld [vmem:[%s198 + $0x18] sm:$0xff]
    %203 = vmatpush.msra.mxu0 0.0
    %204 = vmatpush.msra.mxu0 0.0
    %205 = vmatpush.msra.mxu0 0.0
    %206 = vmatpush.msra.mxu0 0.0
    %207 = vmatpush.msra.mxu0 0.0
    %208 = vmatpush.msra.mxu0 0.0
    %209 = vmatpush.msra.mxu0 0.0
    %210 = vmatpush.msra.mxu0 0.0
    %211 = vmatpush.msra.mxu0 0.0
    %212 = vmatpush.msra.mxu0 0.0
    %213 = vmatpush.msra.mxu0 0.0
    %214 = vmatpush.msra.mxu0 0.0
    %215 = vmatpush.msra.mxu0 %v202
    %216 = vmatpush.msra.mxu0 %v201
    %217 = vmatpush.msra.mxu0 %v200
    %218 = vmatpush.msra.mxu0 %v199
    %219 = vmatmul.f32.gmra.mxu0 %v32
    %v220 = vpop.f32.mrf.mxu0
    %v221 = vadd.f32 0.0, %v220
    %222 = vmatmul.f32.gmra.mxu0 %v35
    %v223 = vpop.f32.mrf.mxu0
    %v224 = vadd.f32 0.0, %v223
    %225 = vdwg.mxu0
    %s226 = scalar_lea.vmem %s2, 64
    %v227 = vld [vmem:[%s226] sm:$0xff]
    %v228 = vld [vmem:[%s226 + $0x8] sm:$0xff]
    %v229 = vld [vmem:[%s226 + $0x10] sm:$0xff]
    %v230 = vld [vmem:[%s226 + $0x18] sm:$0xff]
    %231 = vmatpush.msra.mxu0 0.0
    %232 = vmatpush.msra.mxu0 0.0
    %233 = vmatpush.msra.mxu0 0.0
    %234 = vmatpush.msra.mxu0 0.0
    %235 = vmatpush.msra.mxu0 0.0
    %236 = vmatpush.msra.mxu0 0.0
    %237 = vmatpush.msra.mxu0 0.0
    %238 = vmatpush.msra.mxu0 0.0
    %239 = vmatpush.msra.mxu0 0.0
    %240 = vmatpush.msra.mxu0 0.0
    %241 = vmatpush.msra.mxu0 0.0
    %242 = vmatpush.msra.mxu0 0.0
    %243 = vmatpush.msra.mxu0 %v230
    %244 = vmatpush.msra.mxu0 %v229
    %245 = vmatpush.msra.mxu0 %v228
    %246 = vmatpush.msra.mxu0 %v227
    %247 = vmatmul.f32.gmra.mxu0 %v32
    %v248 = vpop.f32.mrf.mxu0
    %v249 = vadd.f32 0.0, %v248
    %250 = vmatmul.f32.gmra.mxu0 %v35
    %v251 = vpop.f32.mrf.mxu0
    %v252 = vadd.f32 0.0, %v251
    %253 = vdwg.mxu0
    %s254 = scalar_lea.vmem %s3, 64
    %v255 = vld [vmem:[%s254] sm:$0xff]
    %v256 = vld [vmem:[%s254 + $0x8] sm:$0xff]
    %v257 = vld [vmem:[%s254 + $0x10] sm:$0xff]
    %v258 = vld [vmem:[%s254 + $0x18] sm:$0xff]
    %259 = vmatpush.msra.mxu0 0.0
    %260 = vmatpush.msra.mxu0 0.0
    %261 = vmatpush.msra.mxu0 0.0
    %262 = vmatpush.msra.mxu0 0.0
    %263 = vmatpush.msra.mxu0 0.0
    %264 = vmatpush.msra.mxu0 0.0
    %265 = vmatpush.msra.mxu0 0.0
    %266 = vmatpush.msra.mxu0 0.0
    %267 = vmatpush.msra.mxu0 0.0
    %268 = vmatpush.msra.mxu0 0.0
    %269 = vmatpush.msra.mxu0 0.0
    %270 = vmatpush.msra.mxu0 0.0
    %271 = vmatpush.msra.mxu0 %v258
    %272 = vmatpush.msra.mxu0 %v257
    %273 = vmatpush.msra.mxu0 %v256
    %274 = vmatpush.msra.mxu0 %v255
    %275 = vmatmul.f32.gmra.mxu0 %v32
    %v276 = vpop.f32.mrf.mxu0
    %v277 = vadd.f32 0.0, %v276
    %278 = vmatmul.f32.gmra.mxu0 %v35
    %v279 = vpop.f32.mrf.mxu0
    %v280 = vadd.f32 0.0, %v279
    %281 = vdwg.mxu0
    %s282 = scalar_lea.vmem %s1, 96
    %v283 = vld [vmem:[%s282] sm:$0xff]
    %v284 = vld [vmem:[%s282 + $0x8] sm:$0xff]
    %v285 = vld [vmem:[%s282 + $0x10] sm:$0xff]
    %v286 = vld [vmem:[%s282 + $0x18] sm:$0xff]
    %287 = vmatpush.msra.mxu0 0.0
    %288 = vmatpush.msra.mxu0 0.0
    %289 = vmatpush.msra.mxu0 0.0
    %290 = vmatpush.msra.mxu0 0.0
    %291 = vmatpush.msra.mxu0 0.0
    %292 = vmatpush.msra.mxu0 0.0
    %293 = vmatpush.msra.mxu0 0.0
    %294 = vmatpush.msra.mxu0 0.0
    %295 = vmatpush.msra.mxu0 0.0
    %296 = vmatpush.msra.mxu0 0.0
    %297 = vmatpush.msra.mxu0 0.0
    %298 = vmatpush.msra.mxu0 0.0
    %299 = vmatpush.msra.mxu0 %v286
    %300 = vmatpush.msra.mxu0 %v285
    %301 = vmatpush.msra.mxu0 %v284
    %302 = vmatpush.msra.mxu0 %v283
    %303 = vmatmul.f32.gmra.mxu0 %v32
    %v304 = vpop.f32.mrf.mxu0
    %v305 = vadd.f32 0.0, %v304
    %306 = vmatmul.f32.gmra.mxu0 %v35
    %v307 = vpop.f32.mrf.mxu0
    %v308 = vadd.f32 0.0, %v307
    %309 = vdwg.mxu0
    %s310 = scalar_lea.vmem %s2, 96
    %v311 = vld [vmem:[%s310] sm:$0xff]
    %v312 = vld [vmem:[%s310 + $0x8] sm:$0xff]
    %v313 = vld [vmem:[%s310 + $0x10] sm:$0xff]
    %v314 = vld [vmem:[%s310 + $0x18] sm:$0xff]
    %315 = vmatpush.msra.mxu0 0.0
    %316 = vmatpush.msra.mxu0 0.0
    %317 = vmatpush.msra.mxu0 0.0
    %318 = vmatpush.msra.mxu0 0.0
    %319 = vmatpush.msra.mxu0 0.0
    %320 = vmatpush.msra.mxu0 0.0
    %321 = vmatpush.msra.mxu0 0.0
    %322 = vmatpush.msra.mxu0 0.0
    %323 = vmatpush.msra.mxu0 0.0
    %324 = vmatpush.msra.mxu0 0.0
    %325 = vmatpush.msra.mxu0 0.0
    %326 = vmatpush.msra.mxu0 0.0
    %327 = vmatpush.msra.mxu0 %v314
    %328 = vmatpush.msra.mxu0 %v313
    %329 = vmatpush.msra.mxu0 %v312
    %330 = vmatpush.msra.mxu0 %v311
    %331 = vmatmul.f32.gmra.mxu0 %v32
    %v332 = vpop.f32.mrf.mxu0
    %v333 = vadd.f32 0.0, %v332
    %334 = vmatmul.f32.gmra.mxu0 %v35
    %v335 = vpop.f32.mrf.mxu0
    %v336 = vadd.f32 0.0, %v335
    %337 = vdwg.mxu0
    %s338 = scalar_lea.vmem %s3, 96
    %v339 = vld [vmem:[%s338] sm:$0xff]
    %v340 = vld [vmem:[%s338 + $0x8] sm:$0xff]
    %v341 = vld [vmem:[%s338 + $0x10] sm:$0xff]
    %v342 = vld [vmem:[%s338 + $0x18] sm:$0xff]
    %343 = vmatpush.msra.mxu0 0.0
    %344 = vmatpush.msra.mxu0 0.0
    %345 = vmatpush.msra.mxu0 0.0
    %346 = vmatpush.msra.mxu0 0.0
    %347 = vmatpush.msra.mxu0 0.0
    %348 = vmatpush.msra.mxu0 0.0
    %349 = vmatpush.msra.mxu0 0.0
    %350 = vmatpush.msra.mxu0 0.0
    %351 = vmatpush.msra.mxu0 0.0
    %352 = vmatpush.msra.mxu0 0.0
    %353 = vmatpush.msra.mxu0 0.0
    %354 = vmatpush.msra.mxu0 0.0
    %355 = vmatpush.msra.mxu0 %v342
    %356 = vmatpush.msra.mxu0 %v341
    %357 = vmatpush.msra.mxu0 %v340
    %358 = vmatpush.msra.mxu0 %v339
    %359 = vmatmul.f32.gmra.mxu0 %v32
    %v360 = vpop.f32.mrf.mxu0
    %v361 = vadd.f32 0.0, %v360
    %362 = vmatmul.f32.gmra.mxu0 %v35
    %v363 = vpop.f32.mrf.mxu0
    %v364 = vadd.f32 0.0, %v363
    %365 = vdwg.mxu0
    %v366 = vld [vmem:[%s5] sm:$0x1]
    %vm367 = vcmask 130048
    %v369 = vsel %vm367, %v55, 0
    %v372 = vsel %vm367, %v82, 0
    %374 = vmatpush.xpose.msra.mxu0 0.0
    %375 = vmatpush.xpose.msra.mxu0 0.0
    %376 = vmatpush.xpose.msra.mxu0 0.0
    %377 = vmatpush.xpose.msra.mxu0 0.0
    %378 = vmatpush.xpose.msra.mxu0 0.0
    %379 = vmatpush.xpose.msra.mxu0 0.0
    %380 = vmatpush.xpose.msra.mxu0 0.0
    %381 = vmatpush.xpose.msra.mxu0 0.0
    %382 = vmatpush.xpose.msra.mxu0 0.0
    %383 = vmatpush.xpose.msra.mxu0 0.0
    %384 = vmatpush.xpose.msra.mxu0 0.0
    %385 = vmatpush.xpose.msra.mxu0 0.0
    %386 = vmatpush.xpose.msra.mxu0 0.0
    %387 = vmatpush.xpose.msra.mxu0 0.0
    %388 = vmatpush.xpose.msra.mxu0 0.0
    %389 = vmatpush.xpose.msra.mxu0 %v372
    %390 = vmatmul.f32.gmra.mxu0 %v369
    %v391 = vpop.f32.mrf.mxu0
    %v392 = vadd.f32 0.0, %v391
    %393 = vdwg.mxu0
    %vm394 = vcmask 64512
    %v395 = vsel %vm394, %v392, -inf
    %396 = vmax.xlane.f32.xlu0 %v395
    %v397 = vpop.xlane.xlu0 %396
    %v398 = vsub.f32 %v392, %v397
    %v399 = vmul.f32 %v398, 1.442695
    %v400 = vpow.pop %v399
    %v401 = vsel %vm394, %v400, 0.0
    %402 = vadd.xlane.f32.xlu0 %v401
    %v403 = vpop.xlane.xlu0 %402
    %v405 = vsel %vm394, %v400, 0
    %407 = vmatpush.msra.mxu0 0.0
    %408 = vmatpush.msra.mxu0 0.0
    %409 = vmatpush.msra.mxu0 0.0
    %410 = vmatpush.msra.mxu0 0.0
    %411 = vmatpush.msra.mxu0 0.0
    %412 = vmatpush.msra.mxu0 0.0
    %413 = vmatpush.msra.mxu0 0.0
    %414 = vmatpush.msra.mxu0 0.0
    %415 = vmatpush.msra.mxu0 0.0
    %416 = vmatpush.msra.mxu0 0.0
    %417 = vmatpush.msra.mxu0 0.0
    %418 = vmatpush.msra.mxu0 0.0
    %419 = vmatpush.msra.mxu0 0.0
    %420 = vmatpush.msra.mxu0 0.0
    %421 = vmatpush.msra.mxu0 0.0
    %422 = vmatpush.msra.mxu0 %v109
    %423 = vmatmul.f32.gmra.mxu0 %v405
    %v424 = vpop.f32.mrf.mxu0
    %v425 = vadd.f32 0.0, %v424
    %426 = vdwg.mxu0
    %v427 = vrcp.pop %v403
    %v428 = vmul.f32 %v425, %v427
    %v429 = vld [vmem:[%s4] sm:$0xff]
    %v430 = vld [vmem:[%s4 + $0x8] sm:$0xff]
    %v432 = vsel %vm367, %v137, 0
    %v435 = vsel %vm367, %v165, 0
    %437 = vmatpush.xpose.msra.mxu0 0.0
    %438 = vmatpush.xpose.msra.mxu0 0.0
    %439 = vmatpush.xpose.msra.mxu0 0.0
    %440 = vmatpush.xpose.msra.mxu0 0.0
    %441 = vmatpush.xpose.msra.mxu0 0.0
    %442 = vmatpush.xpose.msra.mxu0 0.0
    %443 = vmatpush.xpose.msra.mxu0 0.0
    %444 = vmatpush.xpose.msra.mxu0 0.0
    %445 = vmatpush.xpose.msra.mxu0 0.0
    %446 = vmatpush.xpose.msra.mxu0 0.0
    %447 = vmatpush.xpose.msra.mxu0 0.0
    %448 = vmatpush.xpose.msra.mxu0 0.0
    %449 = vmatpush.xpose.msra.mxu0 0.0
    %450 = vmatpush.xpose.msra.mxu0 0.0
    %451 = vmatpush.xpose.msra.mxu0 0.0
    %452 = vmatpush.xpose.msra.mxu0 %v435
    %453 = vmatmul.f32.gmra.mxu0 %v432
    %v454 = vpop.f32.mrf.mxu0
    %v455 = vadd.f32 0.0, %v454
    %456 = vdwg.mxu0
    %v457 = vsel %vm394, %v455, -inf
    %458 = vmax.xlane.f32.xlu0 %v457
    %v459 = vpop.xlane.xlu0 %458
    %v460 = vsub.f32 %v455, %v459
    %v461 = vmul.f32 %v460, 1.442695
    %v462 = vpow.pop %v461
    %v463 = vsel %vm394, %v462, 0.0
    %464 = vadd.xlane.f32.xlu0 %v463
    %v465 = vpop.xlane.xlu0 %464
    %v467 = vsel %vm394, %v462, 0
    %469 = vmatpush.msra.mxu0 0.0
    %470 = vmatpush.msra.mxu0 0.0
    %471 = vmatpush.msra.mxu0 0.0
    %472 = vmatpush.msra.mxu0 0.0
    %473 = vmatpush.msra.mxu0 0.0
    %474 = vmatpush.msra.mxu0 0.0
    %475 = vmatpush.msra.mxu0 0.0
    %476 = vmatpush.msra.mxu0 0.0
    %477 = vmatpush.msra.mxu0 0.0
    %478 = vmatpush.msra.mxu0 0.0
    %479 = vmatpush.msra.mxu0 0.0
    %480 = vmatpush.msra.mxu0 0.0
    %481 = vmatpush.msra.mxu0 0.0
    %482 = vmatpush.msra.mxu0 0.0
    %483 = vmatpush.msra.mxu0 0.0
    %484 = vmatpush.msra.mxu0 %v193
    %485 = vmatmul.f32.gmra.mxu0 %v467
    %v486 = vpop.f32.mrf.mxu0
    %v487 = vadd.f32 0.0, %v486
    %488 = vdwg.mxu0
    %v489 = vrcp.pop %v465
    %v490 = vmul.f32 %v487, %v489
    %s491 = scalar_lea.vmem %s4, 16
    %v492 = vld [vmem:[%s491] sm:$0xff]
    %v493 = vld [vmem:[%s491 + $0x8] sm:$0xff]
    %v495 = vsel %vm367, %v490, 0
    %497 = vmatpush.msra.mxu0 0.0
    %498 = vmatpush.msra.mxu0 0.0
    %499 = vmatpush.msra.mxu0 0.0
    %500 = vmatpush.msra.mxu0 0.0
    %501 = vmatpush.msra.mxu0 0.0
    %502 = vmatpush.msra.mxu0 0.0
    %503 = vmatpush.msra.mxu0 0.0
    %504 = vmatpush.msra.mxu0 0.0
    %505 = vmatpush.msra.mxu0 0.0
    %506 = vmatpush.msra.mxu0 0.0
    %507 = vmatpush.msra.mxu0 0.0
    %508 = vmatpush.msra.mxu0 0.0
    %509 = vmatpush.msra.mxu0 0.0
    %510 = vmatpush.msra.mxu0 0.0
    %511 = vmatpush.msra.mxu0 %v493
    %512 = vmatpush.msra.mxu0 %v492
    %513 = vmatmul.f32.gmra.mxu0 %v495
    %v514 = vpop.f32.mrf.mxu0
    %v515 = vadd.f32 0.0, %v514
    %516 = vdwg.mxu0
    %v518 = vsel %vm367, %v428, 0
    %520 = vmatpush.msra.mxu0 0.0
    %521 = vmatpush.msra.mxu0 0.0
    %522 = vmatpush.msra.mxu0 0.0
    %523 = vmatpush.msra.mxu0 0.0
    %524 = vmatpush.msra.mxu0 0.0
    %525 = vmatpush.msra.mxu0 0.0
    %526 = vmatpush.msra.mxu0 0.0
    %527 = vmatpush.msra.mxu0 0.0
    %528 = vmatpush.msra.mxu0 0.0
    %529 = vmatpush.msra.mxu0 0.0
    %530 = vmatpush.msra.mxu0 0.0
    %531 = vmatpush.msra.mxu0 0.0
    %532 = vmatpush.msra.mxu0 0.0
    %533 = vmatpush.msra.mxu0 0.0
    %534 = vmatpush.msra.mxu0 %v430
    %535 = vmatpush.msra.mxu0 %v429
    %536 = vmatmul.f32.gmra.mxu0 %v518
    %v537 = vpop.f32.mrf.mxu0
    %v538 = vadd.f32 %v515, %v537
    %539 = vdwg.mxu0
    %v541 = vsel %vm367, %v221, 0
    %v544 = vsel %vm367, %v249, 0
    %546 = vmatpush.xpose.msra.mxu0 0.0
    %547 = vmatpush.xpose.msra.mxu0 0.0
    %548 = vmatpush.xpose.msra.mxu0 0.0
    %549 = vmatpush.xpose.msra.mxu0 0.0
    %550 = vmatpush.xpose.msra.mxu0 0.0
    %551 = vmatpush.xpose.msra.mxu0 0.0
    %552 = vmatpush.xpose.msra.mxu0 0.0
    %553 = vmatpush.xpose.msra.mxu0 0.0
    %554 = vmatpush.xpose.msra.mxu0 0.0
    %555 = vmatpush.xpose.msra.mxu0 0.0
    %556 = vmatpush.xpose.msra.mxu0 0.0
    %557 = vmatpush.xpose.msra.mxu0 0.0
    %558 = vmatpush.xpose.msra.mxu0 0.0
    %559 = vmatpush.xpose.msra.mxu0 0.0
    %560 = vmatpush.xpose.msra.mxu0 0.0
    %561 = vmatpush.xpose.msra.mxu0 %v544
    %562 = vmatmul.f32.gmra.mxu0 %v541
    %v563 = vpop.f32.mrf.mxu0
    %v564 = vadd.f32 0.0, %v563
    %565 = vdwg.mxu0
    %v566 = vsel %vm394, %v564, -inf
    %567 = vmax.xlane.f32.xlu0 %v566
    %v568 = vpop.xlane.xlu0 %567
    %v569 = vsub.f32 %v564, %v568
    %v570 = vmul.f32 %v569, 1.442695
    %v571 = vpow.pop %v570
    %v572 = vsel %vm394, %v571, 0.0
    %573 = vadd.xlane.f32.xlu0 %v572
    %v574 = vpop.xlane.xlu0 %573
    %v576 = vsel %vm394, %v571, 0
    %578 = vmatpush.msra.mxu0 0.0
    %579 = vmatpush.msra.mxu0 0.0
    %580 = vmatpush.msra.mxu0 0.0
    %581 = vmatpush.msra.mxu0 0.0
    %582 = vmatpush.msra.mxu0 0.0
    %583 = vmatpush.msra.mxu0 0.0
    %584 = vmatpush.msra.mxu0 0.0
    %585 = vmatpush.msra.mxu0 0.0
    %586 = vmatpush.msra.mxu0 0.0
    %587 = vmatpush.msra.mxu0 0.0
    %588 = vmatpush.msra.mxu0 0.0
    %589 = vmatpush.msra.mxu0 0.0
    %590 = vmatpush.msra.mxu0 0.0
    %591 = vmatpush.msra.mxu0 0.0
    %592 = vmatpush.msra.mxu0 0.0
    %593 = vmatpush.msra.mxu0 %v277
    %594 = vmatmul.f32.gmra.mxu0 %v576
    %v595 = vpop.f32.mrf.mxu0
    %v596 = vadd.f32 0.0, %v595
    %597 = vdwg.mxu0
    %v598 = vrcp.pop %v574
    %v599 = vmul.f32 %v596, %v598
    %s600 = scalar_lea.vmem %s4, 32
    %v601 = vld [vmem:[%s600] sm:$0xff]
    %v602 = vld [vmem:[%s600 + $0x8] sm:$0xff]
    %v604 = vsel %vm367, %v599, 0
    %606 = vmatpush.msra.mxu0 0.0
    %607 = vmatpush.msra.mxu0 0.0
    %608 = vmatpush.msra.mxu0 0.0
    %609 = vmatpush.msra.mxu0 0.0
    %610 = vmatpush.msra.mxu0 0.0
    %611 = vmatpush.msra.mxu0 0.0
    %612 = vmatpush.msra.mxu0 0.0
    %613 = vmatpush.msra.mxu0 0.0
    %614 = vmatpush.msra.mxu0 0.0
    %615 = vmatpush.msra.mxu0 0.0
    %616 = vmatpush.msra.mxu0 0.0
    %617 = vmatpush.msra.mxu0 0.0
    %618 = vmatpush.msra.mxu0 0.0
    %619 = vmatpush.msra.mxu0 0.0
    %620 = vmatpush.msra.mxu0 %v602
    %621 = vmatpush.msra.mxu0 %v601
    %622 = vmatmul.f32.gmra.mxu0 %v604
    %v623 = vpop.f32.mrf.mxu0
    %v624 = vadd.f32 0.0, %v623
    %625 = vdwg.mxu0
    %v626 = vadd.f32 %v538, %v624
    %v628 = vsel %vm367, %v305, 0
    %v631 = vsel %vm367, %v333, 0
    %633 = vmatpush.xpose.msra.mxu0 0.0
    %634 = vmatpush.xpose.msra.mxu0 0.0
    %635 = vmatpush.xpose.msra.mxu0 0.0
    %636 = vmatpush.xpose.msra.mxu0 0.0
    %637 = vmatpush.xpose.msra.mxu0 0.0
    %638 = vmatpush.xpose.msra.mxu0 0.0
    %639 = vmatpush.xpose.msra.mxu0 0.0
    %640 = vmatpush.xpose.msra.mxu0 0.0
    %641 = vmatpush.xpose.msra.mxu0 0.0
    %642 = vmatpush.xpose.msra.mxu0 0.0
    %643 = vmatpush.xpose.msra.mxu0 0.0
    %644 = vmatpush.xpose.msra.mxu0 0.0
    %645 = vmatpush.xpose.msra.mxu0 0.0
    %646 = vmatpush.xpose.msra.mxu0 0.0
    %647 = vmatpush.xpose.msra.mxu0 0.0
    %648 = vmatpush.xpose.msra.mxu0 %v631
    %649 = vmatmul.f32.gmra.mxu0 %v628
    %v650 = vpop.f32.mrf.mxu0
    %v651 = vadd.f32 0.0, %v650
    %652 = vdwg.mxu0
    %v653 = vsel %vm394, %v651, -inf
    %654 = vmax.xlane.f32.xlu0 %v653
    %v655 = vpop.xlane.xlu0 %654
    %v656 = vsub.f32 %v651, %v655
    %v657 = vmul.f32 %v656, 1.442695
    %v658 = vpow.pop %v657
    %v659 = vsel %vm394, %v658, 0.0
    %660 = vadd.xlane.f32.xlu0 %v659
    %v661 = vpop.xlane.xlu0 %660
    %v663 = vsel %vm394, %v658, 0
    %665 = vmatpush.msra.mxu0 0.0
    %666 = vmatpush.msra.mxu0 0.0
    %667 = vmatpush.msra.mxu0 0.0
    %668 = vmatpush.msra.mxu0 0.0
    %669 = vmatpush.msra.mxu0 0.0
    %670 = vmatpush.msra.mxu0 0.0
    %671 = vmatpush.msra.mxu0 0.0
    %672 = vmatpush.msra.mxu0 0.0
    %673 = vmatpush.msra.mxu0 0.0
    %674 = vmatpush.msra.mxu0 0.0
    %675 = vmatpush.msra.mxu0 0.0
    %676 = vmatpush.msra.mxu0 0.0
    %677 = vmatpush.msra.mxu0 0.0
    %678 = vmatpush.msra.mxu0 0.0
    %679 = vmatpush.msra.mxu0 0.0
    %680 = vmatpush.msra.mxu0 %v361
    %681 = vmatmul.f32.gmra.mxu0 %v663
    %v682 = vpop.f32.mrf.mxu0
    %v683 = vadd.f32 0.0, %v682
    %684 = vdwg.mxu0
    %v685 = vrcp.pop %v661
    %v686 = vmul.f32 %v683, %v685
    %s687 = scalar_lea.vmem %s4, 48
    %v688 = vld [vmem:[%s687] sm:$0xff]
    %v689 = vld [vmem:[%s687 + $0x8] sm:$0xff]
    %v691 = vsel %vm367, %v686, 0
    %693 = vmatpush.msra.mxu0 0.0
    %694 = vmatpush.msra.mxu0 0.0
    %695 = vmatpush.msra.mxu0 0.0
    %696 = vmatpush.msra.mxu0 0.0
    %697 = vmatpush.msra.mxu0 0.0
    %698 = vmatpush.msra.mxu0 0.0
    %699 = vmatpush.msra.mxu0 0.0
    %700 = vmatpush.msra.mxu0 0.0
    %701 = vmatpush.msra.mxu0 0.0
    %702 = vmatpush.msra.mxu0 0.0
    %703 = vmatpush.msra.mxu0 0.0
    %704 = vmatpush.msra.mxu0 0.0
    %705 = vmatpush.msra.mxu0 0.0
    %706 = vmatpush.msra.mxu0 0.0
    %707 = vmatpush.msra.mxu0 %v689
    %708 = vmatpush.msra.mxu0 %v688
    %709 = vmatmul.f32.gmra.mxu0 %v691
    %v710 = vpop.f32.mrf.mxu0
    %v711 = vadd.f32 0.0, %v710
    %712 = vdwg.mxu0
    %v713 = vadd.f32 %v626, %v711
    %v715 = vperm.slane %v366, 0
    %v717 = vadd.f32 %v713, %v715
    %718 = vst.msk [vmem:[#allocation2] sm:$0xff] %vm30, %v717
    %v720 = vsel %vm367, %v58, 0
    %v723 = vsel %vm367, %v85, 0
    %725 = vmatpush.xpose.msra.mxu0 0.0
    %726 = vmatpush.xpose.msra.mxu0 0.0
    %727 = vmatpush.xpose.msra.mxu0 0.0
    %728 = vmatpush.xpose.msra.mxu0 0.0
    %729 = vmatpush.xpose.msra.mxu0 0.0
    %730 = vmatpush.xpose.msra.mxu0 0.0
    %731 = vmatpush.xpose.msra.mxu0 0.0
    %732 = vmatpush.xpose.msra.mxu0 0.0
    %733 = vmatpush.xpose.msra.mxu0 0.0
    %734 = vmatpush.xpose.msra.mxu0 0.0
    %735 = vmatpush.xpose.msra.mxu0 0.0
    %736 = vmatpush.xpose.msra.mxu0 0.0
    %737 = vmatpush.xpose.msra.mxu0 0.0
    %738 = vmatpush.xpose.msra.mxu0 0.0
    %739 = vmatpush.xpose.msra.mxu0 0.0
    %740 = vmatpush.xpose.msra.mxu0 %v723
    %741 = vmatmul.f32.gmra.mxu0 %v720
    %v742 = vpop.f32.mrf.mxu0
    %v743 = vadd.f32 0.0, %v742
    %744 = vdwg.mxu0
    %v745 = vsel %vm394, %v743, -inf
    %746 = vmax.xlane.f32.xlu0 %v745
    %v747 = vpop.xlane.xlu0 %746
    %v748 = vsub.f32 %v743, %v747
    %v749 = vmul.f32 %v748, 1.442695
    %v750 = vpow.pop %v749
    %v751 = vsel %vm394, %v750, 0.0
    %752 = vadd.xlane.f32.xlu0 %v751
    %v753 = vpop.xlane.xlu0 %752
    %v755 = vsel %vm394, %v750, 0
    %757 = vmatpush.msra.mxu0 0.0
    %758 = vmatpush.msra.mxu0 0.0
    %759 = vmatpush.msra.mxu0 0.0
    %760 = vmatpush.msra.mxu0 0.0
    %761 = vmatpush.msra.mxu0 0.0
    %762 = vmatpush.msra.mxu0 0.0
    %763 = vmatpush.msra.mxu0 0.0
    %764 = vmatpush.msra.mxu0 0.0
    %765 = vmatpush.msra.mxu0 0.0
    %766 = vmatpush.msra.mxu0 0.0
    %767 = vmatpush.msra.mxu0 0.0
    %768 = vmatpush.msra.mxu0 0.0
    %769 = vmatpush.msra.mxu0 0.0
    %770 = vmatpush.msra.mxu0 0.0
    %771 = vmatpush.msra.mxu0 0.0
    %772 = vmatpush.msra.mxu0 %v112
    %773 = vmatmul.f32.gmra.mxu0 %v755
    %v774 = vpop.f32.mrf.mxu0
    %v775 = vadd.f32 0.0, %v774
    %776 = vdwg.mxu0
    %v777 = vrcp.pop %v753
    %v778 = vmul.f32 %v775, %v777
    %v779 = vld [vmem:[%s4] sm:$0xff]
    %v780 = vld [vmem:[%s4 + $0x8] sm:$0xff]
    %v782 = vsel %vm367, %v140, 0
    %v785 = vsel %vm367, %v168, 0
    %787 = vmatpush.xpose.msra.mxu0 0.0
    %788 = vmatpush.xpose.msra.mxu0 0.0
    %789 = vmatpush.xpose.msra.mxu0 0.0
    %790 = vmatpush.xpose.msra.mxu0 0.0
    %791 = vmatpush.xpose.msra.mxu0 0.0
    %792 = vmatpush.xpose.msra.mxu0 0.0
    %793 = vmatpush.xpose.msra.mxu0 0.0
    %794 = vmatpush.xpose.msra.mxu0 0.0
    %795 = vmatpush.xpose.msra.mxu0 0.0
    %796 = vmatpush.xpose.msra.mxu0 0.0
    %797 = vmatpush.xpose.msra.mxu0 0.0
    %798 = vmatpush.xpose.msra.mxu0 0.0
    %799 = vmatpush.xpose.msra.mxu0 0.0
    %800 = vmatpush.xpose.msra.mxu0 0.0
    %801 = vmatpush.xpose.msra.mxu0 0.0
    %802 = vmatpush.xpose.msra.mxu0 %v785
    %803 = vmatmul.f32.gmra.mxu0 %v782
    %v804 = vpop.f32.mrf.mxu0
    %v805 = vadd.f32 0.0, %v804
    %806 = vdwg.mxu0
    %v807 = vsel %vm394, %v805, -inf
    %808 = vmax.xlane.f32.xlu0 %v807
    %v809 = vpop.xlane.xlu0 %808
    %v810 = vsub.f32 %v805, %v809
    %v811 = vmul.f32 %v810, 1.442695
    %v812 = vpow.pop %v811
    %v813 = vsel %vm394, %v812, 0.0
    %814 = vadd.xlane.f32.xlu0 %v813
    %v815 = vpop.xlane.xlu0 %814
    %v817 = vsel %vm394, %v812, 0
    %819 = vmatpush.msra.mxu0 0.0
    %820 = vmatpush.msra.mxu0 0.0
    %821 = vmatpush.msra.mxu0 0.0
    %822 = vmatpush.msra.mxu0 0.0
    %823 = vmatpush.msra.mxu0 0.0
    %824 = vmatpush.msra.mxu0 0.0
    %825 = vmatpush.msra.mxu0 0.0
    %826 = vmatpush.msra.mxu0 0.0
    %827 = vmatpush.msra.mxu0 0.0
    %828 = vmatpush.msra.mxu0 0.0
    %829 = vmatpush.msra.mxu0 0.0
    %830 = vmatpush.msra.mxu0 0.0
    %831 = vmatpush.msra.mxu0 0.0
    %832 = vmatpush.msra.mxu0 0.0
    %833 = vmatpush.msra.mxu0 0.0
    %834 = vmatpush.msra.mxu0 %v196
    %835 = vmatmul.f32.gmra.mxu0 %v817
    %v836 = vpop.f32.mrf.mxu0
    %v837 = vadd.f32 0.0, %v836
    %838 = vdwg.mxu0
    %v839 = vrcp.pop %v815
    %v840 = vmul.f32 %v837, %v839
    %v841 = vld [vmem:[%s491] sm:$0xff]
    %v842 = vld [vmem:[%s491 + $0x8] sm:$0xff]
    %v844 = vsel %vm367, %v840, 0
    %846 = vmatpush.msra.mxu0 0.0
    %847 = vmatpush.msra.mxu0 0.0
    %848 = vmatpush.msra.mxu0 0.0
    %849 = vmatpush.msra.mxu0 0.0
    %850 = vmatpush.msra.mxu0 0.0
    %851 = vmatpush.msra.mxu0 0.0
    %852 = vmatpush.msra.mxu0 0.0
    %853 = vmatpush.msra.mxu0 0.0
    %854 = vmatpush.msra.mxu0 0.0
    %855 = vmatpush.msra.mxu0 0.0
    %856 = vmatpush.msra.mxu0 0.0
    %857 = vmatpush.msra.mxu0 0.0
    %858 = vmatpush.msra.mxu0 0.0
    %859 = vmatpush.msra.mxu0 0.0
    %860 = vmatpush.msra.mxu0 %v842
    %861 = vmatpush.msra.mxu0 %v841
    %862 = vmatmul.f32.gmra.mxu0 %v844
    %v863 = vpop.f32.mrf.mxu0
    %v864 = vadd.f32 0.0, %v863
    %865 = vdwg.mxu0
    %v867 = vsel %vm367, %v778, 0
    %869 = vmatpush.msra.mxu0 0.0
    %870 = vmatpush.msra.mxu0 0.0
    %871 = vmatpush.msra.mxu0 0.0
    %872 = vmatpush.msra.mxu0 0.0
    %873 = vmatpush.msra.mxu0 0.0
    %874 = vmatpush.msra.mxu0 0.0
    %875 = vmatpush.msra.mxu0 0.0
    %876 = vmatpush.msra.mxu0 0.0
    %877 = vmatpush.msra.mxu0 0.0
    %878 = vmatpush.msra.mxu0 0.0
    %879 = vmatpush.msra.mxu0 0.0
    %880 = vmatpush.msra.mxu0 0.0
    %881 = vmatpush.msra.mxu0 0.0
    %882 = vmatpush.msra.mxu0 0.0
    %883 = vmatpush.msra.mxu0 %v780
    %884 = vmatpush.msra.mxu0 %v779
    %885 = vmatmul.f32.gmra.mxu0 %v867
    %v886 = vpop.f32.mrf.mxu0
    %v887 = vadd.f32 %v864, %v886
    %888 = vdwg.mxu0
    %v890 = vsel %vm367, %v224, 0
    %v893 = vsel %vm367, %v252, 0
    %895 = vmatpush.xpose.msra.mxu0 0.0
    %896 = vmatpush.xpose.msra.mxu0 0.0
    %897 = vmatpush.xpose.msra.mxu0 0.0
    %898 = vmatpush.xpose.msra.mxu0 0.0
    %899 = vmatpush.xpose.msra.mxu0 0.0
    %900 = vmatpush.xpose.msra.mxu0 0.0
    %901 = vmatpush.xpose.msra.mxu0 0.0
    %902 = vmatpush.xpose.msra.mxu0 0.0
    %903 = vmatpush.xpose.msra.mxu0 0.0
    %904 = vmatpush.xpose.msra.mxu0 0.0
    %905 = vmatpush.xpose.msra.mxu0 0.0
    %906 = vmatpush.xpose.msra.mxu0 0.0
    %907 = vmatpush.xpose.msra.mxu0 0.0
    %908 = vmatpush.xpose.msra.mxu0 0.0
    %909 = vmatpush.xpose.msra.mxu0 0.0
    %910 = vmatpush.xpose.msra.mxu0 %v893
    %911 = vmatmul.f32.gmra.mxu0 %v890
    %v912 = vpop.f32.mrf.mxu0
    %v913 = vadd.f32 0.0, %v912
    %914 = vdwg.mxu0
    %v915 = vsel %vm394, %v913, -inf
    %916 = vmax.xlane.f32.xlu0 %v915
    %v917 = vpop.xlane.xlu0 %916
    %v918 = vsub.f32 %v913, %v917
    %v919 = vmul.f32 %v918, 1.442695
    %v920 = vpow.pop %v919
    %v921 = vsel %vm394, %v920, 0.0
    %922 = vadd.xlane.f32.xlu0 %v921
    %v923 = vpop.xlane.xlu0 %922
    %v925 = vsel %vm394, %v920, 0
    %927 = vmatpush.msra.mxu0 0.0
    %928 = vmatpush.msra.mxu0 0.0
    %929 = vmatpush.msra.mxu0 0.0
    %930 = vmatpush.msra.mxu0 0.0
    %931 = vmatpush.msra.mxu0 0.0
    %932 = vmatpush.msra.mxu0 0.0
    %933 = vmatpush.msra.mxu0 0.0
    %934 = vmatpush.msra.mxu0 0.0
    %935 = vmatpush.msra.mxu0 0.0
    %936 = vmatpush.msra.mxu0 0.0
    %937 = vmatpush.msra.mxu0 0.0
    %938 = vmatpush.msra.mxu0 0.0
    %939 = vmatpush.msra.mxu0 0.0
    %940 = vmatpush.msra.mxu0 0.0
    %941 = vmatpush.msra.mxu0 0.0
    %942 = vmatpush.msra.mxu0 %v280
    %943 = vmatmul.f32.gmra.mxu0 %v925
    %v944 = vpop.f32.mrf.mxu0
    %v945 = vadd.f32 0.0, %v944
    %946 = vdwg.mxu0
    %v947 = vrcp.pop %v923
    %v948 = vmul.f32 %v945, %v947
    %v949 = vld [vmem:[%s600] sm:$0xff]
    %v950 = vld [vmem:[%s600 + $0x8] sm:$0xff]
    %v952 = vsel %vm367, %v948, 0
    %954 = vmatpush.msra.mxu0 0.0
    %955 = vmatpush.msra.mxu0 0.0
    %956 = vmatpush.msra.mxu0 0.0
    %957 = vmatpush.msra.mxu0 0.0
    %958 = vmatpush.msra.mxu0 0.0
    %959 = vmatpush.msra.mxu0 0.0
    %960 = vmatpush.msra.mxu0 0.0
    %961 = vmatpush.msra.mxu0 0.0
    %962 = vmatpush.msra.mxu0 0.0
    %963 = vmatpush.msra.mxu0 0.0
    %964 = vmatpush.msra.mxu0 0.0
    %965 = vmatpush.msra.mxu0 0.0
    %966 = vmatpush.msra.mxu0 0.0
    %967 = vmatpush.msra.mxu0 0.0
    %968 = vmatpush.msra.mxu0 %v950
    %969 = vmatpush.msra.mxu0 %v949
    %970 = vmatmul.f32.gmra.mxu0 %v952
    %v971 = vpop.f32.mrf.mxu0
    %v972 = vadd.f32 0.0, %v971
    %973 = vdwg.mxu0
    %v974 = vadd.f32 %v887, %v972
    %v976 = vsel %vm367, %v308, 0
    %v979 = vsel %vm367, %v336, 0
    %981 = vmatpush.xpose.msra.mxu0 0.0
    %982 = vmatpush.xpose.msra.mxu0 0.0
    %983 = vmatpush.xpose.msra.mxu0 0.0
    %984 = vmatpush.xpose.msra.mxu0 0.0
    %985 = vmatpush.xpose.msra.mxu0 0.0
    %986 = vmatpush.xpose.msra.mxu0 0.0
    %987 = vmatpush.xpose.msra.mxu0 0.0
    %988 = vmatpush.xpose.msra.mxu0 0.0
    %989 = vmatpush.xpose.msra.mxu0 0.0
    %990 = vmatpush.xpose.msra.mxu0 0.0
    %991 = vmatpush.xpose.msra.mxu0 0.0
    %992 = vmatpush.xpose.msra.mxu0 0.0
    %993 = vmatpush.xpose.msra.mxu0 0.0
    %994 = vmatpush.xpose.msra.mxu0 0.0
    %995 = vmatpush.xpose.msra.mxu0 0.0
    %996 = vmatpush.xpose.msra.mxu0 %v979
    %997 = vmatmul.f32.gmra.mxu0 %v976
    %v998 = vpop.f32.mrf.mxu0
    %v999 = vadd.f32 0.0, %v998
    %1000 = vdwg.mxu0
    %v1001 = vsel %vm394, %v999, -inf
    %1002 = vmax.xlane.f32.xlu0 %v1001
    %v1003 = vpop.xlane.xlu0 %1002
    %v1004 = vsub.f32 %v999, %v1003
    %v1005 = vmul.f32 %v1004, 1.442695
    %v1006 = vpow.pop %v1005
    %v1007 = vsel %vm394, %v1006, 0.0
    %1008 = vadd.xlane.f32.xlu0 %v1007
    %v1009 = vpop.xlane.xlu0 %1008
    %v1011 = vsel %vm394, %v1006, 0
    %1013 = vmatpush.msra.mxu0 0.0
    %1014 = vmatpush.msra.mxu0 0.0
    %1015 = vmatpush.msra.mxu0 0.0
    %1016 = vmatpush.msra.mxu0 0.0
    %1017 = vmatpush.msra.mxu0 0.0
    %1018 = vmatpush.msra.mxu0 0.0
    %1019 = vmatpush.msra.mxu0 0.0
    %1020 = vmatpush.msra.mxu0 0.0
    %1021 = vmatpush.msra.mxu0 0.0
    %1022 = vmatpush.msra.mxu0 0.0
    %1023 = vmatpush.msra.mxu0 0.0
    %1024 = vmatpush.msra.mxu0 0.0
    %1025 = vmatpush.msra.mxu0 0.0
    %1026 = vmatpush.msra.mxu0 0.0
    %1027 = vmatpush.msra.mxu0 0.0
    %1028 = vmatpush.msra.mxu0 %v364
    %1029 = vmatmul.f32.gmra.mxu0 %v1011
    %v1030 = vpop.f32.mrf.mxu0
    %v1031 = vadd.f32 0.0, %v1030
    %1032 = vdwg.mxu0
    %v1033 = vrcp.pop %v1009
    %v1034 = vmul.f32 %v1031, %v1033
    %v1035 = vld [vmem:[%s687] sm:$0xff]
    %v1036 = vld [vmem:[%s687 + $0x8] sm:$0xff]
    %v1038 = vsel %vm367, %v1034, 0
    %1040 = vmatpush.msra.mxu0 0.0
    %1041 = vmatpush.msra.mxu0 0.0
    %1042 = vmatpush.msra.mxu0 0.0
    %1043 = vmatpush.msra.mxu0 0.0
    %1044 = vmatpush.msra.mxu0 0.0
    %1045 = vmatpush.msra.mxu0 0.0
    %1046 = vmatpush.msra.mxu0 0.0
    %1047 = vmatpush.msra.mxu0 0.0
    %1048 = vmatpush.msra.mxu0 0.0
    %1049 = vmatpush.msra.mxu0 0.0
    %1050 = vmatpush.msra.mxu0 0.0
    %1051 = vmatpush.msra.mxu0 0.0
    %1052 = vmatpush.msra.mxu0 0.0
    %1053 = vmatpush.msra.mxu0 0.0
    %1054 = vmatpush.msra.mxu0 %v1036
    %1055 = vmatpush.msra.mxu0 %v1035
    %1056 = vmatmul.f32.gmra.mxu0 %v1038
    %v1057 = vpop.f32.mrf.mxu0
    %v1058 = vadd.f32 0.0, %v1057
    %1059 = vdwg.mxu0
    %v1060 = vadd.f32 %v974, %v1058
    %v1061 = vadd.f32 %v1060, %v715
    %s1062 = scalar_lea.vmem [#allocation2], 8
    %1063 = vst.msk [vmem:[%s1062] sm:$0xff] %vm30, %v1061
    // Predicated region
    $region26: #{tpu_custom_call.1} parent=1 // pred_check
      _
    $region27: #{tpu_custom_call.1} parent=1 // pred_check_branch
      %1065 = sbr.rel (0) target = $region29
    $region28: #{tpu_custom_call.1} parent=1 // pred_region
      %1067 = vsyncadd [#allocation3], 0
      %s1068 = sshll.u32 [#allocation2], 4
      %s1069 = int_to_ptr.vmem [resolvable:$true] %s1068
      %s1070 = sshll.u32 %s6, 4
      %s1071 = int_to_ptr.hbm [resolvable:$true] %s1070
      %1076 = dma.vmem_to_hbm [thread:$0]  %s1069, 256, %s1071, [#allocation3], 128, 128, 8
    $region29: #{tpu_custom_call.1} parent=1 // pred_fallthru
      _
    // Predicated region
    $region30: #{tpu_custom_call.1} parent=1 // pred_check
      _
    $region31: #{tpu_custom_call.1} parent=1 // pred_check_branch
      %1078 = sbr.rel (0) target = $region33
    $region32: #{tpu_custom_call.1} parent=1 // pred_region
      %1080 = dma.done [#allocation3], 256
    $region33: #{tpu_custom_call.1} parent=1 // pred_fallthru
      _
    %1081 = vsyncpa [#allocation3], 1

</llo_original>
